<compile_context>
chip_gen: v7x
topology: tpu7x:2x2x1
jax: 0.10.0
libtpu: 0.0.40
codegen_flags: <defaults>
</compile_context>

<pallas_src>
import jax
import jax.numpy as jnp
from jax.experimental import pallas as pl
from jax.experimental.pallas import tpu as pltpu

# ---- GPT hyperparameters (small, synthetic) ----
VOCAB = 64
VOCAB_PAD = 128            # pad LM head to 128 lanes -> lane-dense output stores
D_MODEL = 32
N_HEADS = 2
HEAD_DIM = D_MODEL // N_HEADS
D_FF = 64
MAX_SEQ = 8                # wrapper.max_sequence_length
EPS = 1e-5
QKV_BLOCK = 128            # lane-aligned block per (tensor, head) in the fused QKV weight


def _make_gpt_kernel(B: int, S_PAD: int):
    BS = B * S_PAD         # sublane-aligned token count (multiple of 8)

    def kernel(tok_ref, mask_ref, temb_ref, pemb_ref, lng_ref, lnb_ref,
               wqkv_ref, wo_ref, w1_ref, b1_ref, w2_ref, b2_ref, wlm_ref,
               out_ref):
        lng = lng_ref[...]                                 # (3, D) f32
        lnb = lnb_ref[...]                                 # (3, D) f32

        def layernorm(h, i):
            # Two independent reductions (mean, mean of squares) issued together.
            mu = jnp.mean(h, axis=-1, keepdims=True)
            ms = jnp.mean(h * h, axis=-1, keepdims=True)
            inv = jax.lax.rsqrt(ms - mu * mu + EPS)
            return (h - mu) * inv * lng[i:i + 1, :] + lnb[i:i + 1, :]

        # ---- fused embedding: one-hot token lookup + one-hot positional lookup on MXU ----
        tok = tok_ref[...]                                               # (BS, 1) int32
        v_iota = jax.lax.broadcasted_iota(jnp.int32, (BS, VOCAB), 1)
        tok_oh = (v_iota == tok).astype(jnp.bfloat16)                    # (BS, VOCAB)
        row = jax.lax.broadcasted_iota(jnp.int32, (BS, S_PAD), 0)
        col = jax.lax.broadcasted_iota(jnp.int32, (BS, S_PAD), 1)
        pos_oh = row == col                                              # pos(r) = r mod S_PAD,
        for b in range(1, B):                                            # built without integer mod
            pos_oh = jnp.logical_or(pos_oh, row == col + b * S_PAD)
        x = (jnp.dot(tok_oh, temb_ref[...], preferred_element_type=jnp.float32)
             + jnp.dot(pos_oh.astype(jnp.bfloat16), pemb_ref[...],
                       preferred_element_type=jnp.float32))              # (BS, D) f32 residual

        # ---- causal + key-padding mask (padded key positions carry mask == 0) ----
        qpos = jax.lax.broadcasted_iota(jnp.int32, (S_PAD, S_PAD), 0)
        kpos = jax.lax.broadcasted_iota(jnp.int32, (S_PAD, S_PAD), 1)
        causal = qpos >= kpos                                            # (S_PAD, S_PAD)
        keep = mask_ref[...] > 0                                         # (B, S_PAD)
        valid = jnp.logical_and(causal[None, :, :], keep[:, None, :])    # (B, S_PAD, S_PAD)
        # NOTE: fully masked query rows softmax to a uniform average (finite); padded rows
        # are sliced off in the wrapper and real padded positions are assumed masked at the loss.

        # ---- self-attention: fused QKV, each (tensor, head) in its own 128-lane block ----
        h1 = layernorm(x, 0).astype(jnp.bfloat16)
        qkv = jnp.dot(h1, wqkv_ref[...], preferred_element_type=jnp.float32)  # (BS, 6*128)

        def head_slice(t, h):   # starts on a 128-lane vreg boundary -> no lane rotates
            g = t * N_HEADS + h
            return qkv[:, g * QKV_BLOCK:g * QKV_BLOCK + HEAD_DIM]

        wo = wo_ref[...]                                   # (D, D) bf16, loaded once
        attn_out = None
        for h in range(N_HEADS):                           # static unroll (N_HEADS=2)
            qh = head_slice(0, h).astype(jnp.bfloat16).reshape(B, S_PAD, HEAD_DIM)
            kh = head_slice(1, h).astype(jnp.bfloat16).reshape(B, S_PAD, HEAD_DIM)
            vh = head_slice(2, h).astype(jnp.bfloat16).reshape(B, S_PAD, HEAD_DIM)
            s = jnp.einsum('bqd,bkd->bqk', qh, kh,
                           preferred_element_type=jnp.float32)           # (B, S_PAD, S_PAD)
            s = jnp.where(valid, s, -1e30)
            s = s - jnp.max(s, axis=-1, keepdims=True)
            p = jnp.exp(s)
            p = p * pl.reciprocal(jnp.sum(p, axis=-1, keepdims=True), approx=True)
            oh = jnp.einsum('bqk,bkd->bqd', p.astype(jnp.bfloat16), vh,
                            preferred_element_type=jnp.float32)          # (B, S_PAD, Hd)
            contrib = jnp.dot(oh.reshape(BS, HEAD_DIM).astype(jnp.bfloat16),
                              wo[h * HEAD_DIM:(h + 1) * HEAD_DIM, :],
                              preferred_element_type=jnp.float32)
            attn_out = contrib if attn_out is None else attn_out + contrib
        x = x + attn_out

        # ---- feed-forward ----
        h2 = layernorm(x, 1).astype(jnp.bfloat16)
        ff = jnp.dot(h2, w1_ref[...], preferred_element_type=jnp.float32) + b1_ref[...]
        ff = jnp.maximum(ff, 0.0).astype(jnp.bfloat16)
        x = x + jnp.dot(ff, w2_ref[...], preferred_element_type=jnp.float32) + b2_ref[...]

        # ---- final LN + LM head: (BS, 128) f32, fully lane/sublane-aligned unmasked vst ----
        hf = layernorm(x, 2).astype(jnp.bfloat16)
        out_ref[...] = jnp.dot(hf, wlm_ref[...], preferred_element_type=jnp.float32)

    return kernel


def gpt_forward(fused, tokens, mask):
    """tokens: (B, S) int, mask: (B, S) -> logits (B, S, VOCAB) float32."""
    B, S = tokens.shape
    S_PAD = ((S + 7) // 8) * 8          # pad sequence so BS is sublane aligned (7 -> 8)
    assert S_PAD <= MAX_SEQ, "sequence longer than model max_sequence_length"
    BS_PAD = B * S_PAD

    tok_pad = jnp.zeros((B, S_PAD), jnp.int32).at[:, :S].set(tokens.astype(jnp.int32))
    mask_pad = jnp.zeros((B, S_PAD), jnp.int32).at[:, :S].set(mask.astype(jnp.int32))
    tok_flat = tok_pad.reshape(BS_PAD, 1)
    pos_emb = fused["pos_emb"][:S_PAD]

    args = (tok_flat, mask_pad, fused["tok_emb"], pos_emb,
            fused["ln_g"], fused["ln_b"], fused["w_qkv"], fused["wo"],
            fused["w1"], fused["b1"], fused["w2"], fused["b2"], fused["w_lm_pad"])

    def full(a):
        n = a.ndim

        def index_map(i, n=n):
            return (0,) * n

        return pl.BlockSpec(a.shape, index_map)

    # Advisory cost model: helps XLA schedule the surrounding HLOs around this tiny call.
    flops = (2 * BS_PAD * D_MODEL * (VOCAB + S_PAD + 3 * N_HEADS * QKV_BLOCK
                                     + D_MODEL + 2 * D_FF + VOCAB_PAD)
             + 4 * B * N_HEADS * S_PAD * S_PAD * HEAD_DIM)
    bytes_accessed = (sum(int(a.size) * a.dtype.itemsize for a in args)
                      + BS_PAD * VOCAB_PAD * 4)
    cost = pl.CostEstimate(flops=flops,
                           transcendentals=B * N_HEADS * S_PAD * S_PAD,
                           bytes_accessed=bytes_accessed)

    logits = pl.pallas_call(
        _make_gpt_kernel(B, S_PAD),
        out_shape=jax.ShapeDtypeStruct((BS_PAD, VOCAB_PAD), jnp.float32),
        grid=(1,),
        in_specs=[full(a) for a in args],
        out_specs=pl.BlockSpec((BS_PAD, VOCAB_PAD), lambda i: (0, 0)),
        compiler_params=pltpu.CompilerParams(dimension_semantics=("arbitrary",)),
        cost_estimate=cost,
    )(*args)

    # TODO(synk): when a fused loss follows, keep the padded (S_PAD, 128) logits and mask
    # the padded vocab columns there instead of slicing back to (S, 64) here.
    return logits.reshape(B, S_PAD, VOCAB_PAD)[:, :S, :VOCAB]


@jax.jit
def autoregressive_wrapper_forward(fused, x, mask):
    """Exact semantics of AutoregressiveWrapper.forward."""
    inp, target = x[:, :-1], x[:, 1:]
    mask_in = mask[:, :-1]
    output = gpt_forward(fused, inp, mask_in)
    return output, target


def init_params(key):
    """Logical (PyTorch-style) parameters."""
    ks = jax.random.split(key, 9)
    scale = 0.02
    return {
        "tok_emb": scale * jax.random.normal(ks[0], (VOCAB, D_MODEL), jnp.float32),
        "pos_emb": scale * jax.random.normal(ks[1], (MAX_SEQ, D_MODEL), jnp.float32),
        "ln1_g": jnp.ones((1, D_MODEL), jnp.float32),
        "ln1_b": jnp.zeros((1, D_MODEL), jnp.float32),
        "wq": scale * jax.random.normal(ks[2], (D_MODEL, D_MODEL), jnp.float32),
        "wk": scale * jax.random.normal(ks[3], (D_MODEL, D_MODEL), jnp.float32),
        "wv": scale * jax.random.normal(ks[4], (D_MODEL, D_MODEL), jnp.float32),
        "wo": scale * jax.random.normal(ks[5], (D_MODEL, D_MODEL), jnp.float32),
        "ln2_g": jnp.ones((1, D_MODEL), jnp.float32),
        "ln2_b": jnp.zeros((1, D_MODEL), jnp.float32),
        "w1": scale * jax.random.normal(ks[6], (D_MODEL, D_FF), jnp.float32),
        "b1": jnp.zeros((1, D_FF), jnp.float32),
        "w2": scale * jax.random.normal(ks[7], (D_FF, D_MODEL), jnp.float32),
        "b2": jnp.zeros((1, D_MODEL), jnp.float32),
        "lnf_g": jnp.ones((1, D_MODEL), jnp.float32),
        "lnf_b": jnp.zeros((1, D_MODEL), jnp.float32),
        "w_lm": scale * jax.random.normal(ks[8], (D_MODEL, VOCAB), jnp.float32),
    }


def fuse_params(p):
    """One-time fusion: head-major, 128-lane-padded QKV blocks (attention scale folded
    into the Q blocks), stacked LN params, zero-padded LM head, bf16 MXU weights
    (biases / LN stay f32), bf16 embedding tables for the in-kernel one-hot matmuls."""
    inv_scale = 1.0 / (HEAD_DIM ** 0.5)
    blocks = []
    for w, sc in ((p["wq"], inv_scale), (p["wk"], 1.0), (p["wv"], 1.0)):
        for h in range(N_HEADS):
            blk = jnp.zeros((D_MODEL, QKV_BLOCK), jnp.float32)
            blk = blk.at[:, :HEAD_DIM].set(w[:, h * HEAD_DIM:(h + 1) * HEAD_DIM] * sc)
            blocks.append(blk)
    w_qkv = jnp.concatenate(blocks, axis=1)                                # (D, 6*128)
    ln_g = jnp.concatenate([p["ln1_g"], p["ln2_g"], p["lnf_g"]], axis=0)   # (3, D)
    ln_b = jnp.concatenate([p["ln1_b"], p["ln2_b"], p["lnf_b"]], axis=0)   # (3, D)
    w_lm_pad = jnp.pad(p["w_lm"], ((0, 0), (0, VOCAB_PAD - VOCAB)))        # (D, 128)
    return {
        "tok_emb": p["tok_emb"].astype(jnp.bfloat16),
        "pos_emb": p["pos_emb"].astype(jnp.bfloat16),
        "ln_g": ln_g.astype(jnp.float32),
        "ln_b": ln_b.astype(jnp.float32),
        "w_qkv": w_qkv.astype(jnp.bfloat16),
        "wo": p["wo"].astype(jnp.bfloat16),
        "w1": p["w1"].astype(jnp.bfloat16),
        "b1": p["b1"].astype(jnp.float32),
        "w2": p["w2"].astype(jnp.bfloat16),
        "b2": p["b2"].astype(jnp.float32),
        "w_lm_pad": w_lm_pad.astype(jnp.bfloat16),
    }


if __name__ == "__main__":
    key = jax.random.PRNGKey(0)
    k_par, k_tok = jax.random.split(key)
    params = init_params(k_par)
    fused = fuse_params(params)

    B, SEQ = 2, MAX_SEQ            # full sequence length 8 -> model sees 7 tokens
    x = jax.random.randint(k_tok, (B, SEQ), 0, VOCAB, dtype=jnp.int32)
    mask = jnp.ones((B, SEQ), dtype=jnp.int32)
    mask = mask.at[1, 6:].set(0)   # some padding on the second sequence

    output, target = autoregressive_wrapper_forward(fused, x, mask)
    jax.block_until_ready((output, target))

    assert output.shape == (B, SEQ - 1, VOCAB), output.shape
    assert target.shape == (B, SEQ - 1), target.shape
    assert bool(jnp.all(jnp.isfinite(output)))
    print("KERNEL_OK")
</pallas_src>

<mosaic_0001>
module attributes {stable_mosaic.version = 11 : i64} {
  func.func @kernel(%arg0: i32, %arg1: memref<16x1xi32, #tpu.memory_space<vmem>>, %arg2: memref<2x8xi32, #tpu.memory_space<vmem>>, %arg3: memref<64x32xbf16, #tpu.memory_space<vmem>>, %arg4: memref<8x32xbf16, #tpu.memory_space<vmem>>, %arg5: memref<3x32xf32, #tpu.memory_space<vmem>>, %arg6: memref<3x32xf32, #tpu.memory_space<vmem>>, %arg7: memref<32x768xbf16, #tpu.memory_space<vmem>>, %arg8: memref<32x32xbf16, #tpu.memory_space<vmem>>, %arg9: memref<32x64xbf16, #tpu.memory_space<vmem>>, %arg10: memref<1x64xf32, #tpu.memory_space<vmem>>, %arg11: memref<64x32xbf16, #tpu.memory_space<vmem>>, %arg12: memref<1x32xf32, #tpu.memory_space<vmem>>, %arg13: memref<32x128xbf16, #tpu.memory_space<vmem>>, %arg14: memref<16x128xf32, #tpu.memory_space<vmem>>) attributes {dimension_semantics = [#tpu.dimension_semantics<arbitrary>], iteration_bounds = array<i64: 1>, scalar_prefetch = 0 : i64, scratch_operands = 0 : i64, tpu.core_type = #tpu.core_type<tc>, window_params = [{pipeline_mode = #tpu.pipeline_mode<synchronous>, transform_indices = @transform_0, window_bounds = array<i64: 16, 1>}, {pipeline_mode = #tpu.pipeline_mode<synchronous>, transform_indices = @transform_1, window_bounds = array<i64: 2, 8>}, {pipeline_mode = #tpu.pipeline_mode<synchronous>, transform_indices = @transform_2, window_bounds = array<i64: 64, 32>}, {pipeline_mode = #tpu.pipeline_mode<synchronous>, transform_indices = @transform_3, window_bounds = array<i64: 8, 32>}, {pipeline_mode = #tpu.pipeline_mode<synchronous>, transform_indices = @transform_4, window_bounds = array<i64: 3, 32>}, {pipeline_mode = #tpu.pipeline_mode<synchronous>, transform_indices = @transform_5, window_bounds = array<i64: 3, 32>}, {pipeline_mode = #tpu.pipeline_mode<synchronous>, transform_indices = @transform_6, window_bounds = array<i64: 32, 768>}, {pipeline_mode = #tpu.pipeline_mode<synchronous>, transform_indices = @transform_7, window_bounds = array<i64: 32, 32>}, {pipeline_mode = #tpu.pipeline_mode<synchronous>, transform_indices = @transform_8, window_bounds = array<i64: 32, 64>}, {pipeline_mode = #tpu.pipeline_mode<synchronous>, transform_indices = @transform_9, window_bounds = array<i64: 1, 64>}, {pipeline_mode = #tpu.pipeline_mode<synchronous>, transform_indices = @transform_10, window_bounds = array<i64: 64, 32>}, {pipeline_mode = #tpu.pipeline_mode<synchronous>, transform_indices = @transform_11, window_bounds = array<i64: 1, 32>}, {pipeline_mode = #tpu.pipeline_mode<synchronous>, transform_indices = @transform_12, window_bounds = array<i64: 32, 128>}, {pipeline_mode = #tpu.pipeline_mode<synchronous>, transform_indices = @transform_13, window_bounds = array<i64: 16, 128>}]} {
    %c0 = arith.constant 0 : index
    %c0_0 = arith.constant 0 : index
    %0 = vector.load %arg5[%c0, %c0_0] : memref<3x32xf32, #tpu.memory_space<vmem>>, vector<3x32xf32>
    %c0_1 = arith.constant 0 : index
    %c0_2 = arith.constant 0 : index
    %1 = vector.load %arg6[%c0_1, %c0_2] : memref<3x32xf32, #tpu.memory_space<vmem>>, vector<3x32xf32>
    %c0_3 = arith.constant 0 : index
    %c0_4 = arith.constant 0 : index
    %2 = vector.load %arg1[%c0_3, %c0_4] : memref<16x1xi32, #tpu.memory_space<vmem>>, vector<16x1xi32>
    %3 = tpu.iota {dimensions = array<i32: 1>} : vector<16x64xi32>
    %4 = vector.broadcast %2 : vector<16x1xi32> to vector<16x64xi32>
    %5 = arith.cmpi eq, %3, %4 : vector<16x64xi32>
    %6 = arith.extui %5 : vector<16x64xi1> to vector<16x64xi32>
    %7 = arith.sitofp %6 : vector<16x64xi32> to vector<16x64xf32>
    %8 = arith.truncf %7 : vector<16x64xf32> to vector<16x64xbf16>
    %9 = tpu.iota {dimensions = array<i32: 0>} : vector<16x8xi32>
    %10 = tpu.iota {dimensions = array<i32: 1>} : vector<16x8xi32>
    %11 = arith.cmpi eq, %9, %10 : vector<16x8xi32>
    %c8_i32 = arith.constant 8 : i32
    %12 = vector.broadcast %c8_i32 : i32 to vector<16x8xi32>
    %13 = arith.addi %10, %12 : vector<16x8xi32>
    %14 = arith.cmpi eq, %9, %13 : vector<16x8xi32>
    %15 = arith.ori %11, %14 : vector<16x8xi1>
    %c0_5 = arith.constant 0 : index
    %c0_6 = arith.constant 0 : index
    %16 = vector.load %arg3[%c0_5, %c0_6] : memref<64x32xbf16, #tpu.memory_space<vmem>>, vector<64x32xbf16>
    %cst = arith.constant dense<0.000000e+00> : vector<16x32xf32>
    %17 = tpu.matmul %8, %16, %cst {dimension_numbers = #tpu.dot_dimension_numbers<[1], [0], [0], [1], [0, 0, 1, 1], [], []>} : vector<16x64xbf16>, vector<64x32xbf16>, vector<16x32xf32> -> vector<16x32xf32>
    %18 = arith.extui %15 : vector<16x8xi1> to vector<16x8xi32>
    %19 = arith.sitofp %18 : vector<16x8xi32> to vector<16x8xf32>
    %20 = arith.truncf %19 : vector<16x8xf32> to vector<16x8xbf16>
    %c0_7 = arith.constant 0 : index
    %c0_8 = arith.constant 0 : index
    %21 = vector.load %arg4[%c0_7, %c0_8] : memref<8x32xbf16, #tpu.memory_space<vmem>>, vector<8x32xbf16>
    %cst_9 = arith.constant dense<0.000000e+00> : vector<16x32xf32>
    %22 = tpu.matmul %20, %21, %cst_9 {dimension_numbers = #tpu.dot_dimension_numbers<[1], [0], [0], [1], [0, 0, 1, 1], [], []>} : vector<16x8xbf16>, vector<8x32xbf16>, vector<16x32xf32> -> vector<16x32xf32>
    %23 = arith.addf %17, %22 : vector<16x32xf32>
    %24 = tpu.iota {dimensions = array<i32: 0>} : vector<8x8xi32>
    %25 = tpu.iota {dimensions = array<i32: 1>} : vector<8x8xi32>
    %26 = arith.cmpi sge, %24, %25 : vector<8x8xi32>
    %c0_10 = arith.constant 0 : index
    %c0_11 = arith.constant 0 : index
    %27 = vector.load %arg2[%c0_10, %c0_11] : memref<2x8xi32, #tpu.memory_space<vmem>>, vector<2x8xi32>
    %c0_i32 = arith.constant 0 : i32
    %28 = vector.broadcast %c0_i32 : i32 to vector<2x8xi32>
    %29 = arith.cmpi sgt, %27, %28 : vector<2x8xi32>
    %30 = vector.shape_cast %26 : vector<8x8xi1> to vector<1x8x8xi1>
    %31 = vector.shape_cast %29 : vector<2x8xi1> to vector<2x1x8xi1>
    %32 = vector.broadcast %30 : vector<1x8x8xi1> to vector<2x8x8xi1>
    %33 = vector.broadcast %31 : vector<2x1x8xi1> to vector<2x8x8xi1>
    %34 = arith.andi %32, %33 : vector<2x8x8xi1>
    %cst_12 = arith.constant dense<0.000000e+00> : vector<16xf32>
    %35 = vector.multi_reduction <add>, %23, %cst_12 [1] : vector<16x32xf32> to vector<16xf32>
    %36 = vector.shape_cast %35 : vector<16xf32> to vector<16x1xf32>
    %cst_13 = arith.constant 3.200000e+01 : f32
    %37 = vector.broadcast %cst_13 : f32 to vector<16x1xf32>
    %38 = arith.divf %36, %37 : vector<16x1xf32>
    %39 = arith.mulf %23, %23 : vector<16x32xf32>
    %cst_14 = arith.constant dense<0.000000e+00> : vector<16xf32>
    %40 = vector.multi_reduction <add>, %39, %cst_14 [1] : vector<16x32xf32> to vector<16xf32>
    %41 = vector.shape_cast %40 : vector<16xf32> to vector<16x1xf32>
    %cst_15 = arith.constant 3.200000e+01 : f32
    %42 = vector.broadcast %cst_15 : f32 to vector<16x1xf32>
    %43 = arith.divf %41, %42 : vector<16x1xf32>
    %44 = arith.mulf %38, %38 : vector<16x1xf32>
    %45 = arith.subf %43, %44 : vector<16x1xf32>
    %cst_16 = arith.constant 9.99999974E-6 : f32
    %46 = vector.broadcast %cst_16 : f32 to vector<16x1xf32>
    %47 = arith.addf %45, %46 : vector<16x1xf32>
    %48 = math.rsqrt %47 : vector<16x1xf32>
    %49 = vector.broadcast %38 : vector<16x1xf32> to vector<16x32xf32>
    %50 = arith.subf %23, %49 : vector<16x32xf32>
    %51 = vector.broadcast %48 : vector<16x1xf32> to vector<16x32xf32>
    %52 = arith.mulf %50, %51 : vector<16x32xf32>
    %53 = vector.extract_strided_slice %0 {offsets = [0, 0], sizes = [1, 32], strides = [1, 1]} : vector<3x32xf32> to vector<1x32xf32>
    %54 = vector.broadcast %53 : vector<1x32xf32> to vector<16x32xf32>
    %55 = arith.mulf %52, %54 : vector<16x32xf32>
    %56 = vector.extract_strided_slice %1 {offsets = [0, 0], sizes = [1, 32], strides = [1, 1]} : vector<3x32xf32> to vector<1x32xf32>
    %57 = vector.broadcast %56 : vector<1x32xf32> to vector<16x32xf32>
    %58 = arith.addf %55, %57 : vector<16x32xf32>
    %59 = arith.truncf %58 : vector<16x32xf32> to vector<16x32xbf16>
    %c0_17 = arith.constant 0 : index
    %c0_18 = arith.constant 0 : index
    %60 = vector.load %arg7[%c0_17, %c0_18] : memref<32x768xbf16, #tpu.memory_space<vmem>>, vector<32x768xbf16>
    %cst_19 = arith.constant dense<0.000000e+00> : vector<16x768xf32>
    %61 = tpu.matmul %59, %60, %cst_19 {dimension_numbers = #tpu.dot_dimension_numbers<[1], [0], [0], [1], [0, 0, 1, 1], [], []>} : vector<16x32xbf16>, vector<32x768xbf16>, vector<16x768xf32> -> vector<16x768xf32>
    %c0_20 = arith.constant 0 : index
    %c0_21 = arith.constant 0 : index
    %62 = vector.load %arg8[%c0_20, %c0_21] : memref<32x32xbf16, #tpu.memory_space<vmem>>, vector<32x32xbf16>
    %63 = vector.extract_strided_slice %61 {offsets = [0, 0], sizes = [16, 16], strides = [1, 1]} : vector<16x768xf32> to vector<16x16xf32>
    %64 = arith.truncf %63 : vector<16x16xf32> to vector<16x16xbf16>
    %65 = vector.shape_cast %64 : vector<16x16xbf16> to vector<2x8x16xbf16>
    %66 = vector.extract_strided_slice %61 {offsets = [0, 256], sizes = [16, 16], strides = [1, 1]} : vector<16x768xf32> to vector<16x16xf32>
    %67 = arith.truncf %66 : vector<16x16xf32> to vector<16x16xbf16>
    %68 = vector.shape_cast %67 : vector<16x16xbf16> to vector<2x8x16xbf16>
    %69 = vector.extract_strided_slice %61 {offsets = [0, 512], sizes = [16, 16], strides = [1, 1]} : vector<16x768xf32> to vector<16x16xf32>
    %70 = arith.truncf %69 : vector<16x16xf32> to vector<16x16xbf16>
    %71 = vector.shape_cast %70 : vector<16x16xbf16> to vector<2x8x16xbf16>
    "tpu.trace_start"() <{level = 10 : i32, message = "bqd,bkd->bqk"}> : () -> ()
    %cst_22 = arith.constant dense<0.000000e+00> : vector<2x8x8xf32>
    %72 = tpu.matmul %65, %68, %cst_22 {dimension_numbers = #tpu.dot_dimension_numbers<[2], [2], [1], [1], [0, 0, 0, 1, 1, 1], [0], [0]>} : vector<2x8x16xbf16>, vector<2x8x16xbf16>, vector<2x8x8xf32> -> vector<2x8x8xf32>
    %cst_23 = arith.constant -1.000000e+30 : f32
    "tpu.trace_stop"() : () -> ()
    %73 = vector.broadcast %cst_23 : f32 to vector<2x8x8xf32>
    %74 = arith.select %34, %72, %73 : vector<2x8x8xi1>, vector<2x8x8xf32>
    %cst_24 = arith.constant dense<0xFF800000> : vector<2x8xf32>
    %75 = vector.multi_reduction <maximumf>, %74, %cst_24 [2] : vector<2x8x8xf32> to vector<2x8xf32>
    %76 = vector.shape_cast %75 : vector<2x8xf32> to vector<2x8x1xf32>
    %77 = vector.broadcast %76 : vector<2x8x1xf32> to vector<2x8x8xf32>
    %78 = arith.subf %74, %77 : vector<2x8x8xf32>
    %79 = math.exp %78 : vector<2x8x8xf32>
    %cst_25 = arith.constant dense<0.000000e+00> : vector<2x8xf32>
    %80 = vector.multi_reduction <add>, %79, %cst_25 [2] : vector<2x8x8xf32> to vector<2x8xf32>
    %81 = vector.shape_cast %80 : vector<2x8xf32> to vector<2x8x1xf32>
    %82 = tpu.reciprocal %81 {approx = true} : vector<2x8x1xf32> -> vector<2x8x1xf32>
    %83 = vector.broadcast %82 : vector<2x8x1xf32> to vector<2x8x8xf32>
    %84 = arith.mulf %79, %83 : vector<2x8x8xf32>
    %85 = arith.truncf %84 : vector<2x8x8xf32> to vector<2x8x8xbf16>
    "tpu.trace_start"() <{level = 10 : i32, message = "bqk,bkd->bqd"}> : () -> ()
    %cst_26 = arith.constant dense<0.000000e+00> : vector<2x8x16xf32>
    %86 = tpu.matmul %85, %71, %cst_26 {dimension_numbers = #tpu.dot_dimension_numbers<[2], [1], [1], [2], [0, 0, 0, 1, 1, 2], [0], [0]>} : vector<2x8x8xbf16>, vector<2x8x16xbf16>, vector<2x8x16xf32> -> vector<2x8x16xf32>
    "tpu.trace_stop"() : () -> ()
    %87 = vector.shape_cast %86 : vector<2x8x16xf32> to vector<16x16xf32>
    %88 = arith.truncf %87 : vector<16x16xf32> to vector<16x16xbf16>
    %89 = vector.extract_strided_slice %62 {offsets = [0, 0], sizes = [16, 32], strides = [1, 1]} : vector<32x32xbf16> to vector<16x32xbf16>
    %cst_27 = arith.constant dense<0.000000e+00> : vector<16x32xf32>
    %90 = tpu.matmul %88, %89, %cst_27 {dimension_numbers = #tpu.dot_dimension_numbers<[1], [0], [0], [1], [0, 0, 1, 1], [], []>} : vector<16x16xbf16>, vector<16x32xbf16>, vector<16x32xf32> -> vector<16x32xf32>
    %91 = vector.extract_strided_slice %61 {offsets = [0, 128], sizes = [16, 16], strides = [1, 1]} : vector<16x768xf32> to vector<16x16xf32>
    %92 = arith.truncf %91 : vector<16x16xf32> to vector<16x16xbf16>
    %93 = vector.shape_cast %92 : vector<16x16xbf16> to vector<2x8x16xbf16>
    %94 = vector.extract_strided_slice %61 {offsets = [0, 384], sizes = [16, 16], strides = [1, 1]} : vector<16x768xf32> to vector<16x16xf32>
    %95 = arith.truncf %94 : vector<16x16xf32> to vector<16x16xbf16>
    %96 = vector.shape_cast %95 : vector<16x16xbf16> to vector<2x8x16xbf16>
    %97 = vector.extract_strided_slice %61 {offsets = [0, 640], sizes = [16, 16], strides = [1, 1]} : vector<16x768xf32> to vector<16x16xf32>
    %98 = arith.truncf %97 : vector<16x16xf32> to vector<16x16xbf16>
    %99 = vector.shape_cast %98 : vector<16x16xbf16> to vector<2x8x16xbf16>
    "tpu.trace_start"() <{level = 10 : i32, message = "bqd,bkd->bqk"}> : () -> ()
    %cst_28 = arith.constant dense<0.000000e+00> : vector<2x8x8xf32>
    %100 = tpu.matmul %93, %96, %cst_28 {dimension_numbers = #tpu.dot_dimension_numbers<[2], [2], [1], [1], [0, 0, 0, 1, 1, 1], [0], [0]>} : vector<2x8x16xbf16>, vector<2x8x16xbf16>, vector<2x8x8xf32> -> vector<2x8x8xf32>
    %cst_29 = arith.constant -1.000000e+30 : f32
    "tpu.trace_stop"() : () -> ()
    %101 = vector.broadcast %cst_29 : f32 to vector<2x8x8xf32>
    %102 = arith.select %34, %100, %101 : vector<2x8x8xi1>, vector<2x8x8xf32>
    %cst_30 = arith.constant dense<0xFF800000> : vector<2x8xf32>
    %103 = vector.multi_reduction <maximumf>, %102, %cst_30 [2] : vector<2x8x8xf32> to vector<2x8xf32>
    %104 = vector.shape_cast %103 : vector<2x8xf32> to vector<2x8x1xf32>
    %105 = vector.broadcast %104 : vector<2x8x1xf32> to vector<2x8x8xf32>
    %106 = arith.subf %102, %105 : vector<2x8x8xf32>
    %107 = math.exp %106 : vector<2x8x8xf32>
    %cst_31 = arith.constant dense<0.000000e+00> : vector<2x8xf32>
    %108 = vector.multi_reduction <add>, %107, %cst_31 [2] : vector<2x8x8xf32> to vector<2x8xf32>
    %109 = vector.shape_cast %108 : vector<2x8xf32> to vector<2x8x1xf32>
    %110 = tpu.reciprocal %109 {approx = true} : vector<2x8x1xf32> -> vector<2x8x1xf32>
    %111 = vector.broadcast %110 : vector<2x8x1xf32> to vector<2x8x8xf32>
    %112 = arith.mulf %107, %111 : vector<2x8x8xf32>
    %113 = arith.truncf %112 : vector<2x8x8xf32> to vector<2x8x8xbf16>
    "tpu.trace_start"() <{level = 10 : i32, message = "bqk,bkd->bqd"}> : () -> ()
    %cst_32 = arith.constant dense<0.000000e+00> : vector<2x8x16xf32>
    %114 = tpu.matmul %113, %99, %cst_32 {dimension_numbers = #tpu.dot_dimension_numbers<[2], [1], [1], [2], [0, 0, 0, 1, 1, 2], [0], [0]>} : vector<2x8x8xbf16>, vector<2x8x16xbf16>, vector<2x8x16xf32> -> vector<2x8x16xf32>
    "tpu.trace_stop"() : () -> ()
    %115 = vector.shape_cast %114 : vector<2x8x16xf32> to vector<16x16xf32>
    %116 = arith.truncf %115 : vector<16x16xf32> to vector<16x16xbf16>
    %117 = vector.extract_strided_slice %62 {offsets = [16, 0], sizes = [16, 32], strides = [1, 1]} : vector<32x32xbf16> to vector<16x32xbf16>
    %cst_33 = arith.constant dense<0.000000e+00> : vector<16x32xf32>
    %118 = tpu.matmul %116, %117, %cst_33 {dimension_numbers = #tpu.dot_dimension_numbers<[1], [0], [0], [1], [0, 0, 1, 1], [], []>} : vector<16x16xbf16>, vector<16x32xbf16>, vector<16x32xf32> -> vector<16x32xf32>
    %119 = arith.addf %90, %118 : vector<16x32xf32>
    %120 = arith.addf %23, %119 : vector<16x32xf32>
    %cst_34 = arith.constant dense<0.000000e+00> : vector<16xf32>
    %121 = vector.multi_reduction <add>, %120, %cst_34 [1] : vector<16x32xf32> to vector<16xf32>
    %122 = vector.shape_cast %121 : vector<16xf32> to vector<16x1xf32>
    %cst_35 = arith.constant 3.200000e+01 : f32
    %123 = vector.broadcast %cst_35 : f32 to vector<16x1xf32>
    %124 = arith.divf %122, %123 : vector<16x1xf32>
    %125 = arith.mulf %120, %120 : vector<16x32xf32>
    %cst_36 = arith.constant dense<0.000000e+00> : vector<16xf32>
    %126 = vector.multi_reduction <add>, %125, %cst_36 [1] : vector<16x32xf32> to vector<16xf32>
    %127 = vector.shape_cast %126 : vector<16xf32> to vector<16x1xf32>
    %cst_37 = arith.constant 3.200000e+01 : f32
    %128 = vector.broadcast %cst_37 : f32 to vector<16x1xf32>
    %129 = arith.divf %127, %128 : vector<16x1xf32>
    %130 = arith.mulf %124, %124 : vector<16x1xf32>
    %131 = arith.subf %129, %130 : vector<16x1xf32>
    %cst_38 = arith.constant 9.99999974E-6 : f32
    %132 = vector.broadcast %cst_38 : f32 to vector<16x1xf32>
    %133 = arith.addf %131, %132 : vector<16x1xf32>
    %134 = math.rsqrt %133 : vector<16x1xf32>
    %135 = vector.broadcast %124 : vector<16x1xf32> to vector<16x32xf32>
    %136 = arith.subf %120, %135 : vector<16x32xf32>
    %137 = vector.broadcast %134 : vector<16x1xf32> to vector<16x32xf32>
    %138 = arith.mulf %136, %137 : vector<16x32xf32>
    %139 = vector.extract_strided_slice %0 {offsets = [1, 0], sizes = [1, 32], strides = [1, 1]} : vector<3x32xf32> to vector<1x32xf32>
    %140 = vector.broadcast %139 : vector<1x32xf32> to vector<16x32xf32>
    %141 = arith.mulf %138, %140 : vector<16x32xf32>
    %142 = vector.extract_strided_slice %1 {offsets = [1, 0], sizes = [1, 32], strides = [1, 1]} : vector<3x32xf32> to vector<1x32xf32>
    %143 = vector.broadcast %142 : vector<1x32xf32> to vector<16x32xf32>
    %144 = arith.addf %141, %143 : vector<16x32xf32>
    %145 = arith.truncf %144 : vector<16x32xf32> to vector<16x32xbf16>
    %c0_39 = arith.constant 0 : index
    %c0_40 = arith.constant 0 : index
    %146 = vector.load %arg9[%c0_39, %c0_40] : memref<32x64xbf16, #tpu.memory_space<vmem>>, vector<32x64xbf16>
    %cst_41 = arith.constant dense<0.000000e+00> : vector<16x64xf32>
    %147 = tpu.matmul %145, %146, %cst_41 {dimension_numbers = #tpu.dot_dimension_numbers<[1], [0], [0], [1], [0, 0, 1, 1], [], []>} : vector<16x32xbf16>, vector<32x64xbf16>, vector<16x64xf32> -> vector<16x64xf32>
    %c0_42 = arith.constant 0 : index
    %c0_43 = arith.constant 0 : index
    %148 = vector.load %arg10[%c0_42, %c0_43] : memref<1x64xf32, #tpu.memory_space<vmem>>, vector<1x64xf32>
    %149 = vector.broadcast %148 : vector<1x64xf32> to vector<16x64xf32>
    %150 = arith.addf %147, %149 : vector<16x64xf32>
    %cst_44 = arith.constant 0.000000e+00 : f32
    %151 = vector.broadcast %cst_44 : f32 to vector<16x64xf32>
    %152 = arith.maximumf %150, %151 : vector<16x64xf32>
    %153 = arith.truncf %152 : vector<16x64xf32> to vector<16x64xbf16>
    %c0_45 = arith.constant 0 : index
    %c0_46 = arith.constant 0 : index
    %154 = vector.load %arg11[%c0_45, %c0_46] : memref<64x32xbf16, #tpu.memory_space<vmem>>, vector<64x32xbf16>
    %cst_47 = arith.constant dense<0.000000e+00> : vector<16x32xf32>
    %155 = tpu.matmul %153, %154, %cst_47 {dimension_numbers = #tpu.dot_dimension_numbers<[1], [0], [0], [1], [0, 0, 1, 1], [], []>} : vector<16x64xbf16>, vector<64x32xbf16>, vector<16x32xf32> -> vector<16x32xf32>
    %156 = arith.addf %120, %155 : vector<16x32xf32>
    %c0_48 = arith.constant 0 : index
    %c0_49 = arith.constant 0 : index
    %157 = vector.load %arg12[%c0_48, %c0_49] : memref<1x32xf32, #tpu.memory_space<vmem>>, vector<1x32xf32>
    %158 = vector.broadcast %157 : vector<1x32xf32> to vector<16x32xf32>
    %159 = arith.addf %156, %158 : vector<16x32xf32>
    %cst_50 = arith.constant dense<0.000000e+00> : vector<16xf32>
    %160 = vector.multi_reduction <add>, %159, %cst_50 [1] : vector<16x32xf32> to vector<16xf32>
    %161 = vector.shape_cast %160 : vector<16xf32> to vector<16x1xf32>
    %cst_51 = arith.constant 3.200000e+01 : f32
    %162 = vector.broadcast %cst_51 : f32 to vector<16x1xf32>
    %163 = arith.divf %161, %162 : vector<16x1xf32>
    %164 = arith.mulf %159, %159 : vector<16x32xf32>
    %cst_52 = arith.constant dense<0.000000e+00> : vector<16xf32>
    %165 = vector.multi_reduction <add>, %164, %cst_52 [1] : vector<16x32xf32> to vector<16xf32>
    %166 = vector.shape_cast %165 : vector<16xf32> to vector<16x1xf32>
    %cst_53 = arith.constant 3.200000e+01 : f32
    %167 = vector.broadcast %cst_53 : f32 to vector<16x1xf32>
    %168 = arith.divf %166, %167 : vector<16x1xf32>
    %169 = arith.mulf %163, %163 : vector<16x1xf32>
    %170 = arith.subf %168, %169 : vector<16x1xf32>
    %cst_54 = arith.constant 9.99999974E-6 : f32
    %171 = vector.broadcast %cst_54 : f32 to vector<16x1xf32>
    %172 = arith.addf %170, %171 : vector<16x1xf32>
    %173 = math.rsqrt %172 : vector<16x1xf32>
    %174 = vector.broadcast %163 : vector<16x1xf32> to vector<16x32xf32>
    %175 = arith.subf %159, %174 : vector<16x32xf32>
    %176 = vector.broadcast %173 : vector<16x1xf32> to vector<16x32xf32>
    %177 = arith.mulf %175, %176 : vector<16x32xf32>
    %178 = vector.extract_strided_slice %0 {offsets = [2, 0], sizes = [1, 32], strides = [1, 1]} : vector<3x32xf32> to vector<1x32xf32>
    %179 = vector.broadcast %178 : vector<1x32xf32> to vector<16x32xf32>
    %180 = arith.mulf %177, %179 : vector<16x32xf32>
    %181 = vector.extract_strided_slice %1 {offsets = [2, 0], sizes = [1, 32], strides = [1, 1]} : vector<3x32xf32> to vector<1x32xf32>
    %182 = vector.broadcast %181 : vector<1x32xf32> to vector<16x32xf32>
    %183 = arith.addf %180, %182 : vector<16x32xf32>
    %184 = arith.truncf %183 : vector<16x32xf32> to vector<16x32xbf16>
    %c0_55 = arith.constant 0 : index
    %c0_56 = arith.constant 0 : index
    %185 = vector.load %arg13[%c0_55, %c0_56] : memref<32x128xbf16, #tpu.memory_space<vmem>>, vector<32x128xbf16>
    %cst_57 = arith.constant dense<0.000000e+00> : vector<16x128xf32>
    %186 = tpu.matmul %184, %185, %cst_57 {dimension_numbers = #tpu.dot_dimension_numbers<[1], [0], [0], [1], [0, 0, 1, 1], [], []>} : vector<16x32xbf16>, vector<32x128xbf16>, vector<16x128xf32> -> vector<16x128xf32>
    %c0_58 = arith.constant 0 : index
    %c0_59 = arith.constant 0 : index
    %187 = vector.load %arg14[%c0_58, %c0_59] : memref<16x128xf32, #tpu.memory_space<vmem>>, vector<16x128xf32>
    tpu.vector_store %arg14[%c0_58, %c0_59], %186 {strides = array<i32>} : memref<16x128xf32, #tpu.memory_space<vmem>>, vector<16x128xf32>,
    return
  }
  func.func @transform_0(%arg0: i32) -> (i32, i32) {
    %c0_i32 = arith.constant 0 : i32
    %c0_i32_0 = arith.constant 0 : i32
    %c0_i32_1 = arith.constant 0 : i32
    return %c0_i32, %c0_i32_0 : i32, i32
  }
  func.func @transform_1(%arg0: i32) -> (i32, i32) {
    %c0_i32 = arith.constant 0 : i32
    %c0_i32_0 = arith.constant 0 : i32
    %c0_i32_1 = arith.constant 0 : i32
    return %c0_i32, %c0_i32_0 : i32, i32
  }
  func.func @transform_2(%arg0: i32) -> (i32, i32) {
    %c0_i32 = arith.constant 0 : i32
    %c0_i32_0 = arith.constant 0 : i32
    %c0_i32_1 = arith.constant 0 : i32
    return %c0_i32, %c0_i32_0 : i32, i32
  }
  func.func @transform_3(%arg0: i32) -> (i32, i32) {
    %c0_i32 = arith.constant 0 : i32
    %c0_i32_0 = arith.constant 0 : i32
    %c0_i32_1 = arith.constant 0 : i32
    return %c0_i32, %c0_i32_0 : i32, i32
  }
  func.func @transform_4(%arg0: i32) -> (i32, i32) {
    %c0_i32 = arith.constant 0 : i32
    %c0_i32_0 = arith.constant 0 : i32
    %c0_i32_1 = arith.constant 0 : i32
    return %c0_i32, %c0_i32_0 : i32, i32
  }
  func.func @transform_5(%arg0: i32) -> (i32, i32) {
    %c0_i32 = arith.constant 0 : i32
    %c0_i32_0 = arith.constant 0 : i32
    %c0_i32_1 = arith.constant 0 : i32
    return %c0_i32, %c0_i32_0 : i32, i32
  }
  func.func @transform_6(%arg0: i32) -> (i32, i32) {
    %c0_i32 = arith.constant 0 : i32
    %c0_i32_0 = arith.constant 0 : i32
    %c0_i32_1 = arith.constant 0 : i32
    return %c0_i32, %c0_i32_0 : i32, i32
  }
  func.func @transform_7(%arg0: i32) -> (i32, i32) {
    %c0_i32 = arith.constant 0 : i32
    %c0_i32_0 = arith.constant 0 : i32
    %c0_i32_1 = arith.constant 0 : i32
    return %c0_i32, %c0_i32_0 : i32, i32
  }
  func.func @transform_8(%arg0: i32) -> (i32, i32) {
    %c0_i32 = arith.constant 0 : i32
    %c0_i32_0 = arith.constant 0 : i32
    %c0_i32_1 = arith.constant 0 : i32
    return %c0_i32, %c0_i32_0 : i32, i32
  }
  func.func @transform_9(%arg0: i32) -> (i32, i32) {
    %c0_i32 = arith.constant 0 : i32
    %c0_i32_0 = arith.constant 0 : i32
    %c0_i32_1 = arith.constant 0 : i32
    return %c0_i32, %c0_i32_0 : i32, i32
  }
  func.func @transform_10(%arg0: i32) -> (i32, i32) {
    %c0_i32 = arith.constant 0 : i32
    %c0_i32_0 = arith.constant 0 : i32
    %c0_i32_1 = arith.constant 0 : i32
    return %c0_i32, %c0_i32_0 : i32, i32
  }
  func.func @transform_11(%arg0: i32) -> (i32, i32) {
    %c0_i32 = arith.constant 0 : i32
    %c0_i32_0 = arith.constant 0 : i32
    %c0_i32_1 = arith.constant 0 : i32
    return %c0_i32, %c0_i32_0 : i32, i32
  }
  func.func @transform_12(%arg0: i32) -> (i32, i32) {
    %c0_i32 = arith.constant 0 : i32
    %c0_i32_0 = arith.constant 0 : i32
    %c0_i32_1 = arith.constant 0 : i32
    return %c0_i32, %c0_i32_0 : i32, i32
  }
  func.func @transform_13(%arg0: i32) -> (i32, i32) {
    %c0_i32 = arith.constant 0 : i32
    %c0_i32_0 = arith.constant 0 : i32
    %c0_i32_1 = arith.constant 0 : i32
    return %c0_i32, %c0_i32_0 : i32, i32
  }
}

</mosaic_0001>

<llo_original>
// kernel: autoregressive_wrapper_forward.1
$region0: #{autoregressive_wrapper_forward.1}
  #allocation0 [shape = 'u32[]', space=smem, size = 0x4, offset = 0x4, fixed_abs, tag = 'smem constant byte address 0x4 - core index']
  #allocation1 [shape = 'u32[144,128]{1,0:T(1,128)}', space=vmem, size = 0x12000, scoped, tag = 'internal scratch']
  %s0 = inlined_call_operand.vmem [shape: s32[16,1], index: 0, kind: input, shape index: {}]
  %s1 = inlined_call_operand.vmem [shape: s32[2,8], index: 1, kind: input, shape index: {}]
  %s2 = inlined_call_operand.vmem [shape: bf16[64,32], index: 2, kind: input, shape index: {}]
  %s3 = inlined_call_operand.vmem [shape: bf16[8,32], index: 3, kind: input, shape index: {}]
  %s4 = inlined_call_operand.vmem [shape: f32[3,32], index: 4, kind: input, shape index: {}]
  %s5 = inlined_call_operand.vmem [shape: f32[3,32], index: 5, kind: input, shape index: {}]
  %s6 = inlined_call_operand.vmem [shape: bf16[32,768], index: 6, kind: input, shape index: {}]
  %s7 = inlined_call_operand.hbm [shape: bf16[32,32], index: 7, kind: input, shape index: {}]
  %s8 = inlined_call_operand.hbm [shape: bf16[32,64], index: 8, kind: input, shape index: {}]
  %s9 = inlined_call_operand.vmem [shape: f32[1,64], index: 9, kind: input, shape index: {}]
  %s10 = inlined_call_operand.vmem [shape: bf16[64,32], index: 10, kind: input, shape index: {}]
  %s11 = inlined_call_operand.vmem [shape: f32[1,32], index: 11, kind: input, shape index: {}]
  %s12 = inlined_call_operand.hbm [shape: bf16[32,128], index: 12, kind: input, shape index: {}]
  %s13 = inlined_call_operand.vmem [shape: f32[16,128], index: 13, kind: output, shape index: {}]
  %s14 = sld [smem:[#allocation0]]
  $region74: #{autoregressive_wrapper_forward.1} parent=0
    _
  %s16 = ssub.s32 1, %s14
  %s17 = scalar_select 0, %s16, %s14
  $region1: #{autoregressive_wrapper_forward.1} parent=0
    #allocation2 [shape = 'u8[8192]{0}', space=vmem, size = 0x2000, scoped, tag = 'input window, operand 7, single buffered']
    #allocation3 [shape = 's32[1]{0}', space=sflag, size = 0x4, scoped, tag = 'scoped memory for autoregressive_wrapper_forward.1']
    #allocation4 [shape = 'u8[8192]{0}', space=vmem, size = 0x2000, scoped, tag = 'input window, operand 8, single buffered']
    #allocation5 [shape = 's32[1]{0}', space=sflag, size = 0x4, scoped, tag = 'scoped memory for autoregressive_wrapper_forward.1']
    #allocation6 [shape = 'u8[8192]{0}', space=vmem, size = 0x2000, scoped, tag = 'input window, operand 12, single buffered']
    %18 = vsyncpa [#allocation3], 0
    %19 = vsyncpa [#allocation5], 0
    // Predicated region
    $region2: #{autoregressive_wrapper_forward.1} parent=1 // pred_check
      _
    $region3: #{autoregressive_wrapper_forward.1} parent=1 // pred_check_branch
      %21 = sbr.rel (0) target = $region5
    $region4: #{autoregressive_wrapper_forward.1} parent=1 // pred_region
      _
    $region5: #{autoregressive_wrapper_forward.1} parent=1 // pred_fallthru
      _
    // Predicated region
    $region6: #{autoregressive_wrapper_forward.1} parent=1 // pred_check
      _
    $region7: #{autoregressive_wrapper_forward.1} parent=1 // pred_check_branch
      %23 = sbr.rel (0) target = $region9
    $region8: #{autoregressive_wrapper_forward.1} parent=1 // pred_region
      _
    $region9: #{autoregressive_wrapper_forward.1} parent=1 // pred_fallthru
      _
    // Predicated region
    $region10: #{autoregressive_wrapper_forward.1} parent=1 // pred_check
      _
    $region11: #{autoregressive_wrapper_forward.1} parent=1 // pred_check_branch
      %25 = sbr.rel (0) target = $region13
    $region12: #{autoregressive_wrapper_forward.1} parent=1 // pred_region
      _
    $region13: #{autoregressive_wrapper_forward.1} parent=1 // pred_fallthru
      _
    // Predicated region
    $region14: #{autoregressive_wrapper_forward.1} parent=1 // pred_check
      _
    $region15: #{autoregressive_wrapper_forward.1} parent=1 // pred_check_branch
      %27 = sbr.rel (0) target = $region17
    $region16: #{autoregressive_wrapper_forward.1} parent=1 // pred_region
      _
    $region17: #{autoregressive_wrapper_forward.1} parent=1 // pred_fallthru
      _
    // Predicated region
    $region18: #{autoregressive_wrapper_forward.1} parent=1 // pred_check
      _
    $region19: #{autoregressive_wrapper_forward.1} parent=1 // pred_check_branch
      %29 = sbr.rel (0) target = $region21
    $region20: #{autoregressive_wrapper_forward.1} parent=1 // pred_region
      _
    $region21: #{autoregressive_wrapper_forward.1} parent=1 // pred_fallthru
      _
    // Predicated region
    $region22: #{autoregressive_wrapper_forward.1} parent=1 // pred_check
      _
    $region23: #{autoregressive_wrapper_forward.1} parent=1 // pred_check_branch
      %31 = sbr.rel (0) target = $region25
    $region24: #{autoregressive_wrapper_forward.1} parent=1 // pred_region
      _
    $region25: #{autoregressive_wrapper_forward.1} parent=1 // pred_fallthru
      _
    // Predicated region
    $region26: #{autoregressive_wrapper_forward.1} parent=1 // pred_check
      _
    $region27: #{autoregressive_wrapper_forward.1} parent=1 // pred_check_branch
      %33 = sbr.rel (0) target = $region29
    $region28: #{autoregressive_wrapper_forward.1} parent=1 // pred_region
      _
    $region29: #{autoregressive_wrapper_forward.1} parent=1 // pred_fallthru
      _
    // Predicated region
    $region30: #{autoregressive_wrapper_forward.1} parent=1 // pred_check
      _
    $region31: #{autoregressive_wrapper_forward.1} parent=1 // pred_check_branch
      %35 = sbr.rel (0) target = $region33
    $region32: #{autoregressive_wrapper_forward.1} parent=1 // pred_region
      %s37 = ssub.s32 256, 256
      %38 = vsyncadd [#allocation3], %s37
      %s39 = sshll.u32 [#allocation2], 4
      %s40 = int_to_ptr.vmem [resolvable:$true] %s39
      %45 = dma.hbm_to_vmem [thread:$0]  %s7, 256, %s40, [#allocation3], 64, 64, 4
    $region33: #{autoregressive_wrapper_forward.1} parent=1 // pred_fallthru
      _
    // Predicated region
    $region34: #{autoregressive_wrapper_forward.1} parent=1 // pred_check
      _
    $region35: #{autoregressive_wrapper_forward.1} parent=1 // pred_check_branch
      %47 = sbr.rel (0) target = $region37
    $region36: #{autoregressive_wrapper_forward.1} parent=1 // pred_region
      %s49 = ssub.s32 256, 256
      %50 = vsyncadd [#allocation5], %s49
      %s51 = sshll.u32 [#allocation4], 4
      %s52 = int_to_ptr.vmem [resolvable:$true] %s51
      %57 = dma.hbm_to_vmem [thread:$0]  %s8, 256, %s52, [#allocation5], 64, 64, 4
    $region37: #{autoregressive_wrapper_forward.1} parent=1 // pred_fallthru
      _
    // Predicated region
    $region38: #{autoregressive_wrapper_forward.1} parent=1 // pred_check
      _
    $region39: #{autoregressive_wrapper_forward.1} parent=1 // pred_check_branch
      %59 = sbr.rel (0) target = $region41
    $region40: #{autoregressive_wrapper_forward.1} parent=1 // pred_region
      _
    $region41: #{autoregressive_wrapper_forward.1} parent=1 // pred_fallthru
      _
    // Predicated region
    $region42: #{autoregressive_wrapper_forward.1} parent=1 // pred_check
      _
    $region43: #{autoregressive_wrapper_forward.1} parent=1 // pred_check_branch
      %61 = sbr.rel (0) target = $region45
    $region44: #{autoregressive_wrapper_forward.1} parent=1 // pred_region
      _
    $region45: #{autoregressive_wrapper_forward.1} parent=1 // pred_fallthru
      _
    // Predicated region
    $region46: #{autoregressive_wrapper_forward.1} parent=1 // pred_check
      _
    $region47: #{autoregressive_wrapper_forward.1} parent=1 // pred_check_branch
      %63 = sbr.rel (0) target = $region49
    $region48: #{autoregressive_wrapper_forward.1} parent=1 // pred_region
      _
    $region49: #{autoregressive_wrapper_forward.1} parent=1 // pred_fallthru
      _
    // Predicated region
    $region50: #{autoregressive_wrapper_forward.1} parent=1 // pred_check
      _
    $region51: #{autoregressive_wrapper_forward.1} parent=1 // pred_check_branch
      %65 = sbr.rel (0) target = $region53
    $region52: #{autoregressive_wrapper_forward.1} parent=1 // pred_region
      %s67 = ssub.s32 256, 256
      %68 = vsyncadd [#allocation5], %s67
      %s69 = sshll.u32 [#allocation6], 4
      %s70 = int_to_ptr.vmem [resolvable:$true] %s69
      %75 = dma.hbm_to_vmem [thread:$0]  %s12, 256, %s70, [#allocation5], 64, 64, 4
    $region53: #{autoregressive_wrapper_forward.1} parent=1 // pred_fallthru
      _
    // Predicated region
    $region54: #{autoregressive_wrapper_forward.1} parent=1 // pred_check
      _
    $region55: #{autoregressive_wrapper_forward.1} parent=1 // pred_check_branch
      %77 = sbr.rel (0) target = $region57
    $region56: #{autoregressive_wrapper_forward.1} parent=1 // pred_region
      %78 = dma.done [#allocation3], 256
    $region57: #{autoregressive_wrapper_forward.1} parent=1 // pred_fallthru
      _
    // Predicated region
    $region58: #{autoregressive_wrapper_forward.1} parent=1 // pred_check
      _
    $region59: #{autoregressive_wrapper_forward.1} parent=1 // pred_check_branch
      %80 = sbr.rel (0) target = $region61
    $region60: #{autoregressive_wrapper_forward.1} parent=1 // pred_region
      %81 = dma.done [#allocation5], 256
    $region61: #{autoregressive_wrapper_forward.1} parent=1 // pred_fallthru
      _
    // Predicated region
    $region62: #{autoregressive_wrapper_forward.1} parent=1 // pred_check
      _
    $region63: #{autoregressive_wrapper_forward.1} parent=1 // pred_check_branch
      %83 = sbr.rel (0) target = $region65
    $region64: #{autoregressive_wrapper_forward.1} parent=1 // pred_region
      %84 = dma.done [#allocation5], 256
    $region65: #{autoregressive_wrapper_forward.1} parent=1 // pred_fallthru
      _
    %v86 = vld [vmem:[%s4] sm:$0x7]
    %v87 = vld [vmem:[%s5] sm:$0x7]
    %v88 = vld [vmem:[%s0] sm:$0xff]
    %v89 = vld [vmem:[%s0 + $0x8] sm:$0xff]
    %v90 = vlaneseq
    %v91 = vand.u32 %v90, 127
    %92 = vset.pattern.permute.xlu0 0
    %93 = vperm.xlu0 %92, %v88
    %v94 = vpop.permute.xlu0 %93
    %95 = vset.pattern.permute.xlu0 0
    %96 = vperm.xlu0 %95, %v89
    %v97 = vpop.permute.xlu0 %96
    %vm98 = vcmp.eq.s32.totalorder %v91, %v94
    %vm99 = vcmp.eq.s32.totalorder %v91, %v97
    %v100 = vsel %vm98, 1, 0
    %v101 = vsel %vm99, 1, 0
    %v102 = vcvt.s32.f32 %v100
    %v103 = vcvt.s32.f32 %v101
    %v104 = vpack.c.bf16 %v103, %v102
    %v105 = vlaneseq
    %v106 = vshrl.u32 %v105, 7
    %v107 = vadd.s32 %v106, 8
    %vm108 = vcmp.eq.s32.totalorder %v106, %v91
    %vm109 = vcmp.eq.s32.totalorder %v107, %v91
    %v110 = vadd.s32 %v91, 8
    %vm111 = vcmp.eq.s32.totalorder %v106, %v110
    %vm112 = vcmp.eq.s32.totalorder %v107, %v110
    %vm113 = vmor %vm108, %vm111
    %vm114 = vmor %vm109, %vm112
    %v115 = vld [vmem:[%s2] sm:$0xf]
    %v116 = vld [vmem:[%s2 + $0x4] sm:$0xf]
    %v117 = vld [vmem:[%s2 + $0x8] sm:$0xf]
    %v118 = vld [vmem:[%s2 + $0xc] sm:$0xf]
    %v119 = vld [vmem:[%s2 + $0x10] sm:$0xf]
    %v120 = vld [vmem:[%s2 + $0x14] sm:$0xf]
    %v121 = vld [vmem:[%s2 + $0x18] sm:$0xf]
    %v122 = vld [vmem:[%s2 + $0x1c] sm:$0xf]
    %v123 = vsel %vm113, 1, 0
    %v124 = vsel %vm114, 1, 0
    %v125 = vcvt.s32.f32 %v123
    %v126 = vcvt.s32.f32 %v124
    %v127 = vpack.c.bf16 %v126, %v125
    %v128 = vld [vmem:[%s3] sm:$0xf]
    %vm129 = vcmask 64512
    %v131 = vsel %vm129, %v127, 0
    %vm133 = vcmask 1043456
    %v135 = vsel %vm133, %v128, 0
    %137 = vmatprep.subr.bf16.mxu0 0
    %138 = vmatpush1.bf16.msra.mxu0 %v135
    %139 = vmatprep.subr.bf16.mxu0 0
    %140 = vmatpush1.bf16.msra.mxu0 0
    %141 = vmatprep.subr.bf16.mxu0 0
    %142 = vmatpush1.bf16.msra.mxu0 0
    %143 = vmatprep.subr.bf16.mxu0 0
    %144 = vmatpush1.bf16.msra.mxu0 0
    %145 = vmatprep.subr.bf16.mxu0 0
    %146 = vmatpush1.bf16.msra.mxu0 0
    %147 = vmatprep.subr.bf16.mxu0 0
    %148 = vmatpush1.bf16.msra.mxu0 0
    %149 = vmatprep.subr.bf16.mxu0 0
    %150 = vmatpush1.bf16.msra.mxu0 0
    %151 = vmatprep.subr.bf16.mxu0 0
    %152 = vmatpush1.bf16.msra.mxu0 0
    %153 = vmatprep.subr.bf16.mxu0 0
    %154 = vmatpush1.bf16.msra.mxu0 0
    %155 = vmatprep.subr.bf16.mxu0 0
    %156 = vmatpush1.bf16.msra.mxu0 0
    %157 = vmatprep.subr.bf16.mxu0 0
    %158 = vmatpush1.bf16.msra.mxu0 0
    %159 = vmatprep.subr.bf16.mxu0 0
    %160 = vmatpush1.bf16.msra.mxu0 0
    %161 = vmatprep.subr.bf16.mxu0 0
    %162 = vmatpush1.bf16.msra.mxu0 0
    %163 = vmatprep.subr.bf16.mxu0 0
    %164 = vmatpush1.bf16.msra.mxu0 0
    %165 = vmatprep.subr.bf16.mxu0 0
    %166 = vmatpush1.bf16.msra.mxu0 0
    %167 = vmatprep.subr.bf16.mxu0 0
    %168 = vmatpush1.bf16.msra.mxu0 0
    %169 = vmatprep.mubr.bf16.mxu0 0
    %170 = vmatmul.mubr.bf16.gmra.mrb[0].mxu0 %v131
    %v171 = vpop.f32.mrb[0].mxu0
    %v172 = vadd.f32 0.0, %v171
    %v173 = vpop.f32.mrb[0].mxu0
    %v174 = vpop.f32.mrb[0].mxu0
    %v175 = vadd.f32 0.0, %v174
    %v176 = vpop.f32.mrb[0].mxu0
    %177 = vdwg.mxu0
    %v186 = vunpack.c.l.b16 %v115
    %v187 = vunpack.c.l.b16 %v116
    %v188 = vunpack.c.l.b16 %v117
    %v189 = vunpack.c.l.b16 %v118
    %v190 = vunpack.c.l.b16 %v119
    %v191 = vunpack.c.l.b16 %v120
    %v192 = vunpack.c.l.b16 %v121
    %v193 = vunpack.c.l.b16 %v122
    %v194 = vpack.c.b16 %v187, %v186
    %v195 = vpack.c.b16 %v189, %v188
    %v196 = vpack.c.b16 %v191, %v190
    %v197 = vpack.c.b16 %v193, %v192
    %vm202 = vcmask 523264
    %v204 = vsel %vm202, %v104, 0
    %206 = vmatprep.subr.bf16.mxu0 0
    %207 = vmatpush1.bf16.msra.mxu0 %v194
    %208 = vmatprep.subr.bf16.mxu0 0
    %209 = vmatpush1.bf16.msra.mxu0 %v195
    %210 = vmatprep.subr.bf16.mxu0 0
    %211 = vmatpush1.bf16.msra.mxu0 %v196
    %212 = vmatprep.subr.bf16.mxu0 0
    %213 = vmatpush1.bf16.msra.mxu0 %v197
    %214 = vmatprep.subr.bf16.mxu0 0
    %215 = vmatpush1.bf16.msra.mxu0 0
    %216 = vmatprep.subr.bf16.mxu0 0
    %217 = vmatpush1.bf16.msra.mxu0 0
    %218 = vmatprep.subr.bf16.mxu0 0
    %219 = vmatpush1.bf16.msra.mxu0 0
    %220 = vmatprep.subr.bf16.mxu0 0
    %221 = vmatpush1.bf16.msra.mxu0 0
    %222 = vmatprep.subr.bf16.mxu0 0
    %223 = vmatpush1.bf16.msra.mxu0 0
    %224 = vmatprep.subr.bf16.mxu0 0
    %225 = vmatpush1.bf16.msra.mxu0 0
    %226 = vmatprep.subr.bf16.mxu0 0
    %227 = vmatpush1.bf16.msra.mxu0 0
    %228 = vmatprep.subr.bf16.mxu0 0
    %229 = vmatpush1.bf16.msra.mxu0 0
    %230 = vmatprep.subr.bf16.mxu0 0
    %231 = vmatpush1.bf16.msra.mxu0 0
    %232 = vmatprep.subr.bf16.mxu0 0
    %233 = vmatpush1.bf16.msra.mxu0 0
    %234 = vmatprep.subr.bf16.mxu0 0
    %235 = vmatpush1.bf16.msra.mxu0 0
    %236 = vmatprep.subr.bf16.mxu0 0
    %237 = vmatpush1.bf16.msra.mxu0 0
    %238 = vmatprep.mubr.bf16.mxu0 0
    %239 = vmatmul.mubr.bf16.gmra.mrb[0].mxu0 %v204
    %v240 = vpop.f32.mrb[0].mxu0
    %v241 = vadd.f32 %v172, %v240
    %v242 = vpop.f32.mrb[0].mxu0
    %v243 = vpop.f32.mrb[0].mxu0
    %v244 = vadd.f32 %v175, %v243
    %v245 = vpop.f32.mrb[0].mxu0
    %246 = vdwg.mxu0
    %vm247 = vcmp.ge.s32.totalorder %v106, %v91
    %v248 = vld [vmem:[%s1] sm:$0x3]
    %vm249 = vcmp.gt.s32.totalorder %v248, 0
    %v250 = vsel %vm249, 1, 0
    %v252 = vunpack.c.l.s4 1966171168
    %v253 = vunpack.c.0.s8 %v252
    %v254 = vlaneseq
    %v255 = vshrl.u32 %v254, 7
    %v256 = vsub.s32 %v253, %v255
    %v257 = vrot.slane %v250, %v256
    %v258 = vcombine.high %v257, %v257
    %v260 = vunpack.c.l.s4 1966171168
    %v261 = vunpack.c.0.s8 %v260
    %v262 = vlaneseq
    %v263 = vshrl.u32 %v262, 7
    %v264 = vsub.s32 %v261, %v263
    %v265 = vrot.slane %v257, %v264
    %v267 = vunpack.c.l.s4 1966171168
    %v268 = vunpack.c.0.s8 %v267
    %v269 = vlaneseq
    %v270 = vshrl.u32 %v269, 7
    %v271 = vsub.s32 %v268, %v270
    %v272 = vrot.slane %v258, %v271
    %vm273 = vcmp.ne.s32.totalorder %v265, 0
    %vm274 = vcmp.ne.s32.totalorder %v272, 0
    %v275 = vsel %vm247, 1, 0
    %vm276 = vcmp.eq.s32.totalorder %v275, 1
    %v277 = vsel %vm273, 1, 0
    %v278 = vsel %vm274, 1, 0
    %v279 = vlaneseq
    %v280 = vshrl.u32 %v279, 7
    %v281 = vsub.s32 0, %v280
    %v282 = vrot.slane %v277, %v281
    %v283 = vlaneseq
    %v284 = vshrl.u32 %v283, 7
    %v285 = vsub.s32 0, %v284
    %v286 = vrot.slane %v278, %v285
    %vm287 = vcmp.eq.s32.totalorder %v282, 1
    %vm288 = vcmp.eq.s32.totalorder %v286, 1
    %vm289 = vmand %vm276, %vm287
    %vm290 = vmand %vm276, %vm288
    %vm291 = vcmask 261120
    %v292 = vsel %vm291, %v241, 0.0
    %293 = vadd.xlane.f32.xlu0 %v292
    %v294 = vpop.xlane.xlu0 %293
    %v295 = vsel %vm291, %v244, 0.0
    %296 = vadd.xlane.f32.xlu0 %v295
    %v297 = vpop.xlane.xlu0 %296
    %v298 = vrcp.pop 32.0
    %v299 = vmul.f32 %v294, %v298
    %v300 = vmul.f32 %v297, %v298
    %v301 = vmul.f32 %v241, %v241
    %v302 = vmul.f32 %v244, %v244
    %v303 = vsel %vm291, %v301, 0.0
    %304 = vadd.xlane.f32.xlu0 %v303
    %v305 = vpop.xlane.xlu0 %304
    %v306 = vsel %vm291, %v302, 0.0
    %307 = vadd.xlane.f32.xlu0 %v306
    %v308 = vpop.xlane.xlu0 %307
    %v309 = vmul.f32 %v305, %v298
    %v310 = vmul.f32 %v308, %v298
    %v311 = vmul.f32 %v299, %v299
    %v312 = vmul.f32 %v300, %v300
    %v313 = vsub.f32 %v309, %v311
    %v314 = vsub.f32 %v310, %v312
    %v315 = vadd.f32 %v313, 1e-05
    %v316 = vadd.f32 %v314, 1e-05
    %v317 = vrsqrt.pop %v315
    %v318 = vrsqrt.pop %v316
    %v319 = vsub.f32 %v241, %v299
    %v320 = vsub.f32 %v244, %v300
    %v321 = vmul.f32 %v319, %v317
    %v322 = vmul.f32 %v320, %v318
    %v323 = vlaneseq
    %v324 = vshrl.u32 %v323, 7
    %v325 = vsub.s32 0, %v324
    %v326 = vrot.slane %v86, %v325
    %v327 = vmul.f32 %v321, %v326
    %v328 = vmul.f32 %v322, %v326
    %v329 = vlaneseq
    %v330 = vshrl.u32 %v329, 7
    %v331 = vsub.s32 0, %v330
    %v332 = vrot.slane %v87, %v331
    %v333 = vadd.f32 %v327, %v332
    %v334 = vadd.f32 %v328, %v332
    %v335 = vpack.c.bf16 %v334, %v333
    %v336 = vld [vmem:[%s6] sm:$0xff]
    %v337 = vld [vmem:[%s6 + $0x8] sm:$0xff]
    %v338 = vld [vmem:[%s6 + $0x10] sm:$0xff]
    %v339 = vld [vmem:[%s6 + $0x18] sm:$0xff]
    %v340 = vld [vmem:[%s6 + $0x20] sm:$0xff]
    %v341 = vld [vmem:[%s6 + $0x28] sm:$0xff]
    %v342 = vld [vmem:[%s6 + $0x30] sm:$0xff]
    %v343 = vld [vmem:[%s6 + $0x38] sm:$0xff]
    %v344 = vld [vmem:[%s6 + $0x40] sm:$0xff]
    %v345 = vld [vmem:[%s6 + $0x48] sm:$0xff]
    %v346 = vld [vmem:[%s6 + $0x50] sm:$0xff]
    %v347 = vld [vmem:[%s6 + $0x58] sm:$0xff]
    %v360 = vunpack.c.l.b16 %v336
    %v361 = vunpack.c.h.b16 %v336
    %v362 = vunpack.c.l.b16 %v337
    %v363 = vunpack.c.h.b16 %v337
    %v364 = vunpack.c.l.b16 %v338
    %v365 = vunpack.c.h.b16 %v338
    %v366 = vunpack.c.l.b16 %v339
    %v367 = vunpack.c.h.b16 %v339
    %v368 = vunpack.c.l.b16 %v340
    %v369 = vunpack.c.h.b16 %v340
    %v370 = vunpack.c.l.b16 %v341
    %v371 = vunpack.c.h.b16 %v341
    %v372 = vunpack.c.l.b16 %v342
    %v373 = vunpack.c.h.b16 %v342
    %v374 = vunpack.c.l.b16 %v343
    %v375 = vunpack.c.h.b16 %v343
    %v376 = vunpack.c.l.b16 %v344
    %v377 = vunpack.c.h.b16 %v344
    %v378 = vunpack.c.l.b16 %v345
    %v379 = vunpack.c.h.b16 %v345
    %v380 = vunpack.c.l.b16 %v346
    %v381 = vunpack.c.h.b16 %v346
    %v382 = vunpack.c.l.b16 %v347
    %v383 = vunpack.c.h.b16 %v347
    %v384 = vpack.c.b16 %v366, %v360
    %v385 = vpack.c.b16 %v367, %v361
    %v386 = vpack.c.b16 %v368, %v362
    %v387 = vpack.c.b16 %v369, %v363
    %v388 = vpack.c.b16 %v370, %v364
    %v389 = vpack.c.b16 %v371, %v365
    %v390 = vpack.c.b16 %v378, %v372
    %v391 = vpack.c.b16 %v379, %v373
    %v392 = vpack.c.b16 %v380, %v374
    %v393 = vpack.c.b16 %v381, %v375
    %v394 = vpack.c.b16 %v382, %v376
    %v395 = vpack.c.b16 %v383, %v377
    %v409 = vsel %vm291, %v335, 0
    %411 = vmatprep.subr.bf16.mxu0 %v385
    %412 = vmatpush1.bf16.msra.mxu0 %v384
    %413 = vmatprep.subr.bf16.mxu0 %v391
    %414 = vmatpush1.bf16.msra.mxu0 %v390
    %415 = vmatprep.subr.bf16.mxu0 0
    %416 = vmatpush1.bf16.msra.mxu0 0
    %417 = vmatprep.subr.bf16.mxu0 0
    %418 = vmatpush1.bf16.msra.mxu0 0
    %419 = vmatprep.subr.bf16.mxu0 0
    %420 = vmatpush1.bf16.msra.mxu0 0
    %421 = vmatprep.subr.bf16.mxu0 0
    %422 = vmatpush1.bf16.msra.mxu0 0
    %423 = vmatprep.subr.bf16.mxu0 0
    %424 = vmatpush1.bf16.msra.mxu0 0
    %425 = vmatprep.subr.bf16.mxu0 0
    %426 = vmatpush1.bf16.msra.mxu0 0
    %427 = vmatprep.subr.bf16.mxu0 0
    %428 = vmatpush1.bf16.msra.mxu0 0
    %429 = vmatprep.subr.bf16.mxu0 0
    %430 = vmatpush1.bf16.msra.mxu0 0
    %431 = vmatprep.subr.bf16.mxu0 0
    %432 = vmatpush1.bf16.msra.mxu0 0
    %433 = vmatprep.subr.bf16.mxu0 0
    %434 = vmatpush1.bf16.msra.mxu0 0
    %435 = vmatprep.subr.bf16.mxu0 0
    %436 = vmatpush1.bf16.msra.mxu0 0
    %437 = vmatprep.subr.bf16.mxu0 0
    %438 = vmatpush1.bf16.msra.mxu0 0
    %439 = vmatprep.subr.bf16.mxu0 0
    %440 = vmatpush1.bf16.msra.mxu0 0
    %441 = vmatprep.subr.bf16.mxu0 0
    %442 = vmatpush1.bf16.msra.mxu0 0
    %443 = vmatprep.mubr.bf16.mxu0 0
    %444 = vmatmul.mubr.bf16.gmra.mrb[0].mxu0 %v409
    %v445 = vpop.f32.mrb[0].mxu0
    %v446 = vadd.f32 0.0, %v445
    %v447 = vpop.f32.mrb[0].mxu0
    %v448 = vadd.f32 0.0, %v447
    %v449 = vpop.f32.mrb[0].mxu0
    %v450 = vadd.f32 0.0, %v449
    %v451 = vpop.f32.mrb[0].mxu0
    %v452 = vadd.f32 0.0, %v451
    %453 = vdwg.mxu0
    %454 = vmatprep.subr.bf16.mxu0 %v387
    %455 = vmatpush1.bf16.msra.mxu0 %v386
    %456 = vmatprep.subr.bf16.mxu0 %v393
    %457 = vmatpush1.bf16.msra.mxu0 %v392
    %458 = vmatprep.subr.bf16.mxu0 0
    %459 = vmatpush1.bf16.msra.mxu0 0
    %460 = vmatprep.subr.bf16.mxu0 0
    %461 = vmatpush1.bf16.msra.mxu0 0
    %462 = vmatprep.subr.bf16.mxu0 0
    %463 = vmatpush1.bf16.msra.mxu0 0
    %464 = vmatprep.subr.bf16.mxu0 0
    %465 = vmatpush1.bf16.msra.mxu0 0
    %466 = vmatprep.subr.bf16.mxu0 0
    %467 = vmatpush1.bf16.msra.mxu0 0
    %468 = vmatprep.subr.bf16.mxu0 0
    %469 = vmatpush1.bf16.msra.mxu0 0
    %470 = vmatprep.subr.bf16.mxu0 0
    %471 = vmatpush1.bf16.msra.mxu0 0
    %472 = vmatprep.subr.bf16.mxu0 0
    %473 = vmatpush1.bf16.msra.mxu0 0
    %474 = vmatprep.subr.bf16.mxu0 0
    %475 = vmatpush1.bf16.msra.mxu0 0
    %476 = vmatprep.subr.bf16.mxu0 0
    %477 = vmatpush1.bf16.msra.mxu0 0
    %478 = vmatprep.subr.bf16.mxu0 0
    %479 = vmatpush1.bf16.msra.mxu0 0
    %480 = vmatprep.subr.bf16.mxu0 0
    %481 = vmatpush1.bf16.msra.mxu0 0
    %482 = vmatprep.subr.bf16.mxu0 0
    %483 = vmatpush1.bf16.msra.mxu0 0
    %484 = vmatprep.subr.bf16.mxu0 0
    %485 = vmatpush1.bf16.msra.mxu0 0
    %486 = vmatprep.mubr.bf16.mxu0 0
    %487 = vmatmul.mubr.bf16.gmra.mrb[0].mxu0 %v409
    %v488 = vpop.f32.mrb[0].mxu0
    %v489 = vadd.f32 0.0, %v488
    %v490 = vpop.f32.mrb[0].mxu0
    %v491 = vadd.f32 0.0, %v490
    %v492 = vpop.f32.mrb[0].mxu0
    %v493 = vadd.f32 0.0, %v492
    %v494 = vpop.f32.mrb[0].mxu0
    %v495 = vadd.f32 0.0, %v494
    %496 = vdwg.mxu0
    %497 = vmatprep.subr.bf16.mxu0 %v389
    %498 = vmatpush1.bf16.msra.mxu0 %v388
    %499 = vmatprep.subr.bf16.mxu0 %v395
    %500 = vmatpush1.bf16.msra.mxu0 %v394
    %501 = vmatprep.subr.bf16.mxu0 0
    %502 = vmatpush1.bf16.msra.mxu0 0
    %503 = vmatprep.subr.bf16.mxu0 0
    %504 = vmatpush1.bf16.msra.mxu0 0
    %505 = vmatprep.subr.bf16.mxu0 0
    %506 = vmatpush1.bf16.msra.mxu0 0
    %507 = vmatprep.subr.bf16.mxu0 0
    %508 = vmatpush1.bf16.msra.mxu0 0
    %509 = vmatprep.subr.bf16.mxu0 0
    %510 = vmatpush1.bf16.msra.mxu0 0
    %511 = vmatprep.subr.bf16.mxu0 0
    %512 = vmatpush1.bf16.msra.mxu0 0
    %513 = vmatprep.subr.bf16.mxu0 0
    %514 = vmatpush1.bf16.msra.mxu0 0
    %515 = vmatprep.subr.bf16.mxu0 0
    %516 = vmatpush1.bf16.msra.mxu0 0
    %517 = vmatprep.subr.bf16.mxu0 0
    %518 = vmatpush1.bf16.msra.mxu0 0
    %519 = vmatprep.subr.bf16.mxu0 0
    %520 = vmatpush1.bf16.msra.mxu0 0
    %521 = vmatprep.subr.bf16.mxu0 0
    %522 = vmatpush1.bf16.msra.mxu0 0
    %523 = vmatprep.subr.bf16.mxu0 0
    %524 = vmatpush1.bf16.msra.mxu0 0
    %525 = vmatprep.subr.bf16.mxu0 0
    %526 = vmatpush1.bf16.msra.mxu0 0
    %527 = vmatprep.subr.bf16.mxu0 0
    %528 = vmatpush1.bf16.msra.mxu0 0
    %529 = vmatprep.mubr.bf16.mxu0 0
    %530 = vmatmul.mubr.bf16.gmra.mrb[0].mxu0 %v409
    %v531 = vpop.f32.mrb[0].mxu0
    %v532 = vadd.f32 0.0, %v531
    %v533 = vpop.f32.mrb[0].mxu0
    %v534 = vadd.f32 0.0, %v533
    %v535 = vpop.f32.mrb[0].mxu0
    %v536 = vadd.f32 0.0, %v535
    %v537 = vpop.f32.mrb[0].mxu0
    %v538 = vadd.f32 0.0, %v537
    %539 = vdwg.mxu0
    %v540 = vld [vmem:[#allocation2] sm:$0xf]
    %v541 = vld [vmem:[#allocation2 + $0x4] sm:$0xf]
    %v542 = vld [vmem:[#allocation2 + $0x8] sm:$0xf]
    %v543 = vld [vmem:[#allocation2 + $0xc] sm:$0xf]
    %v544 = vpack.c.bf16 %v450, %v446
    %v546 = vunpack.c.l.b16 %v544
    %v547 = vunpack.c.h.b16 %v544
    %v548 = vpack.c.b16 %v546, %v546
    %v549 = vpack.c.b16 %v547, %v547
    %v550 = vpack.c.bf16 %v493, %v489
    %v552 = vunpack.c.l.b16 %v550
    %v553 = vunpack.c.h.b16 %v550
    %v554 = vpack.c.b16 %v552, %v552
    %v555 = vpack.c.b16 %v553, %v553
    %v556 = vpack.c.bf16 %v536, %v532
    %v558 = vunpack.c.l.b16 %v556
    %v559 = vunpack.c.h.b16 %v556
    %v560 = vpack.c.b16 %v558, %v558
    %v561 = vpack.c.b16 %v559, %v559
    %vm562 = vcmask 130048
    %v564 = vsel %vm562, %v548, 0
    %v567 = vsel %vm562, %v554, 0
    %569 = vmatprep.subr.bf16.mxu0 0
    %570 = vmatpush1.bf16.xpose.msra.mxu0 %v567
    %571 = vmatprep.subr.bf16.mxu0 0
    %572 = vmatpush1.bf16.xpose.msra.mxu0 0
    %573 = vmatprep.subr.bf16.mxu0 0
    %574 = vmatpush1.bf16.xpose.msra.mxu0 0
    %575 = vmatprep.subr.bf16.mxu0 0
    %576 = vmatpush1.bf16.xpose.msra.mxu0 0
    %577 = vmatprep.subr.bf16.mxu0 0
    %578 = vmatpush1.bf16.xpose.msra.mxu0 0
    %579 = vmatprep.subr.bf16.mxu0 0
    %580 = vmatpush1.bf16.xpose.msra.mxu0 0
    %581 = vmatprep.subr.bf16.mxu0 0
    %582 = vmatpush1.bf16.xpose.msra.mxu0 0
    %583 = vmatprep.subr.bf16.mxu0 0
    %584 = vmatpush1.bf16.xpose.msra.mxu0 0
    %585 = vmatprep.subr.bf16.mxu0 0
    %586 = vmatpush1.bf16.xpose.msra.mxu0 0
    %587 = vmatprep.subr.bf16.mxu0 0
    %588 = vmatpush1.bf16.xpose.msra.mxu0 0
    %589 = vmatprep.subr.bf16.mxu0 0
    %590 = vmatpush1.bf16.xpose.msra.mxu0 0
    %591 = vmatprep.subr.bf16.mxu0 0
    %592 = vmatpush1.bf16.xpose.msra.mxu0 0
    %593 = vmatprep.subr.bf16.mxu0 0
    %594 = vmatpush1.bf16.xpose.msra.mxu0 0
    %595 = vmatprep.subr.bf16.mxu0 0
    %596 = vmatpush1.bf16.xpose.msra.mxu0 0
    %597 = vmatprep.subr.bf16.mxu0 0
    %598 = vmatpush1.bf16.xpose.msra.mxu0 0
    %599 = vmatprep.subr.bf16.mxu0 0
    %600 = vmatpush1.bf16.xpose.msra.mxu0 0
    %601 = vmatprep.mubr.bf16.mxu0 0
    %602 = vmatmul.mubr.bf16.gmra.mrb[0].mxu0 %v564
    %v603 = vpop.f32.mrb[0].mxu0
    %v604 = vadd.f32 0.0, %v603
    %v605 = vpop.f32.mrb[0].mxu0
    %v606 = vpop.f32.mrb[0].mxu0
    %v607 = vpop.f32.mrb[0].mxu0
    %608 = vdwg.mxu0
    %v610 = vsel %vm562, %v549, 0
    %v613 = vsel %vm562, %v555, 0
    %615 = vmatprep.subr.bf16.mxu0 0
    %616 = vmatpush1.bf16.xpose.msra.mxu0 %v613
    %617 = vmatprep.subr.bf16.mxu0 0
    %618 = vmatpush1.bf16.xpose.msra.mxu0 0
    %619 = vmatprep.subr.bf16.mxu0 0
    %620 = vmatpush1.bf16.xpose.msra.mxu0 0
    %621 = vmatprep.subr.bf16.mxu0 0
    %622 = vmatpush1.bf16.xpose.msra.mxu0 0
    %623 = vmatprep.subr.bf16.mxu0 0
    %624 = vmatpush1.bf16.xpose.msra.mxu0 0
    %625 = vmatprep.subr.bf16.mxu0 0
    %626 = vmatpush1.bf16.xpose.msra.mxu0 0
    %627 = vmatprep.subr.bf16.mxu0 0
    %628 = vmatpush1.bf16.xpose.msra.mxu0 0
    %629 = vmatprep.subr.bf16.mxu0 0
    %630 = vmatpush1.bf16.xpose.msra.mxu0 0
    %631 = vmatprep.subr.bf16.mxu0 0
    %632 = vmatpush1.bf16.xpose.msra.mxu0 0
    %633 = vmatprep.subr.bf16.mxu0 0
    %634 = vmatpush1.bf16.xpose.msra.mxu0 0
    %635 = vmatprep.subr.bf16.mxu0 0
    %636 = vmatpush1.bf16.xpose.msra.mxu0 0
    %637 = vmatprep.subr.bf16.mxu0 0
    %638 = vmatpush1.bf16.xpose.msra.mxu0 0
    %639 = vmatprep.subr.bf16.mxu0 0
    %640 = vmatpush1.bf16.xpose.msra.mxu0 0
    %641 = vmatprep.subr.bf16.mxu0 0
    %642 = vmatpush1.bf16.xpose.msra.mxu0 0
    %643 = vmatprep.subr.bf16.mxu0 0
    %644 = vmatpush1.bf16.xpose.msra.mxu0 0
    %645 = vmatprep.subr.bf16.mxu0 0
    %646 = vmatpush1.bf16.xpose.msra.mxu0 0
    %647 = vmatprep.mubr.bf16.mxu0 0
    %648 = vmatmul.mubr.bf16.gmra.mrb[0].mxu0 %v610
    %v649 = vpop.f32.mrb[0].mxu0
    %v650 = vadd.f32 0.0, %v649
    %v651 = vpop.f32.mrb[0].mxu0
    %v652 = vpop.f32.mrb[0].mxu0
    %v653 = vpop.f32.mrb[0].mxu0
    %654 = vdwg.mxu0
    %v655 = vsel %vm289, %v604, -1e+30
    %v656 = vsel %vm290, %v650, -1e+30
    %v657 = vsel %vm129, %v655, -inf
    %658 = vmax.xlane.f32.xlu0 %v657
    %v659 = vpop.xlane.xlu0 %658
    %v660 = vsel %vm129, %v656, -inf
    %661 = vmax.xlane.f32.xlu0 %v660
    %v662 = vpop.xlane.xlu0 %661
    %v663 = vsub.f32 %v655, %v659
    %v664 = vsub.f32 %v656, %v662
    %v665 = vmul.f32 %v663, 1.442695
    %v666 = vpow.pop %v665
    %v667 = vmul.f32 %v664, 1.442695
    %v668 = vpow.pop %v667
    %v669 = vsel %vm129, %v666, 0.0
    %670 = vadd.xlane.f32.xlu0 %v669
    %v671 = vpop.xlane.xlu0 %670
    %v672 = vsel %vm129, %v668, 0.0
    %673 = vadd.xlane.f32.xlu0 %v672
    %v674 = vpop.xlane.xlu0 %673
    %v675 = vrcp.pop %v671
    %v676 = vrcp.pop %v674
    %v677 = vmul.f32 %v666, %v675
    %v678 = vmul.f32 %v668, %v676
    %v679 = vpack.c.bf16 %v677, %v677
    %v680 = vpack.c.bf16 %v678, %v678
    %v682 = vsel %vm129, %v679, 0
    %v685 = vsel %vm133, %v560, 0
    %687 = vmatprep.subr.bf16.mxu0 0
    %688 = vmatpush1.bf16.msra.mxu0 %v685
    %689 = vmatprep.subr.bf16.mxu0 0
    %690 = vmatpush1.bf16.msra.mxu0 0
    %691 = vmatprep.subr.bf16.mxu0 0
    %692 = vmatpush1.bf16.msra.mxu0 0
    %693 = vmatprep.subr.bf16.mxu0 0
    %694 = vmatpush1.bf16.msra.mxu0 0
    %695 = vmatprep.subr.bf16.mxu0 0
    %696 = vmatpush1.bf16.msra.mxu0 0
    %697 = vmatprep.subr.bf16.mxu0 0
    %698 = vmatpush1.bf16.msra.mxu0 0
    %699 = vmatprep.subr.bf16.mxu0 0
    %700 = vmatpush1.bf16.msra.mxu0 0
    %701 = vmatprep.subr.bf16.mxu0 0
    %702 = vmatpush1.bf16.msra.mxu0 0
    %703 = vmatprep.subr.bf16.mxu0 0
    %704 = vmatpush1.bf16.msra.mxu0 0
    %705 = vmatprep.subr.bf16.mxu0 0
    %706 = vmatpush1.bf16.msra.mxu0 0
    %707 = vmatprep.subr.bf16.mxu0 0
    %708 = vmatpush1.bf16.msra.mxu0 0
    %709 = vmatprep.subr.bf16.mxu0 0
    %710 = vmatpush1.bf16.msra.mxu0 0
    %711 = vmatprep.subr.bf16.mxu0 0
    %712 = vmatpush1.bf16.msra.mxu0 0
    %713 = vmatprep.subr.bf16.mxu0 0
    %714 = vmatpush1.bf16.msra.mxu0 0
    %715 = vmatprep.subr.bf16.mxu0 0
    %716 = vmatpush1.bf16.msra.mxu0 0
    %717 = vmatprep.subr.bf16.mxu0 0
    %718 = vmatpush1.bf16.msra.mxu0 0
    %719 = vmatprep.mubr.bf16.mxu0 0
    %720 = vmatmul.mubr.bf16.gmra.mrb[0].mxu0 %v682
    %v721 = vpop.f32.mrb[0].mxu0
    %v722 = vadd.f32 0.0, %v721
    %v723 = vpop.f32.mrb[0].mxu0
    %v724 = vpop.f32.mrb[0].mxu0
    %v725 = vpop.f32.mrb[0].mxu0
    %726 = vdwg.mxu0
    %v728 = vsel %vm129, %v680, 0
    %v731 = vsel %vm133, %v561, 0
    %733 = vmatprep.subr.bf16.mxu0 0
    %734 = vmatpush1.bf16.msra.mxu0 %v731
    %735 = vmatprep.subr.bf16.mxu0 0
    %736 = vmatpush1.bf16.msra.mxu0 0
    %737 = vmatprep.subr.bf16.mxu0 0
    %738 = vmatpush1.bf16.msra.mxu0 0
    %739 = vmatprep.subr.bf16.mxu0 0
    %740 = vmatpush1.bf16.msra.mxu0 0
    %741 = vmatprep.subr.bf16.mxu0 0
    %742 = vmatpush1.bf16.msra.mxu0 0
    %743 = vmatprep.subr.bf16.mxu0 0
    %744 = vmatpush1.bf16.msra.mxu0 0
    %745 = vmatprep.subr.bf16.mxu0 0
    %746 = vmatpush1.bf16.msra.mxu0 0
    %747 = vmatprep.subr.bf16.mxu0 0
    %748 = vmatpush1.bf16.msra.mxu0 0
    %749 = vmatprep.subr.bf16.mxu0 0
    %750 = vmatpush1.bf16.msra.mxu0 0
    %751 = vmatprep.subr.bf16.mxu0 0
    %752 = vmatpush1.bf16.msra.mxu0 0
    %753 = vmatprep.subr.bf16.mxu0 0
    %754 = vmatpush1.bf16.msra.mxu0 0
    %755 = vmatprep.subr.bf16.mxu0 0
    %756 = vmatpush1.bf16.msra.mxu0 0
    %757 = vmatprep.subr.bf16.mxu0 0
    %758 = vmatpush1.bf16.msra.mxu0 0
    %759 = vmatprep.subr.bf16.mxu0 0
    %760 = vmatpush1.bf16.msra.mxu0 0
    %761 = vmatprep.subr.bf16.mxu0 0
    %762 = vmatpush1.bf16.msra.mxu0 0
    %763 = vmatprep.subr.bf16.mxu0 0
    %764 = vmatpush1.bf16.msra.mxu0 0
    %765 = vmatprep.mubr.bf16.mxu0 0
    %766 = vmatmul.mubr.bf16.gmra.mrb[0].mxu0 %v728
    %v767 = vpop.f32.mrb[0].mxu0
    %v768 = vadd.f32 0.0, %v767
    %v769 = vpop.f32.mrb[0].mxu0
    %v770 = vpop.f32.mrb[0].mxu0
    %v771 = vpop.f32.mrb[0].mxu0
    %772 = vdwg.mxu0
    %v773 = vpack.c.bf16 %v768, %v722
    %v774 = vpack.c.bf16 %v452, %v448
    %v776 = vunpack.c.l.b16 %v774
    %v777 = vunpack.c.h.b16 %v774
    %v778 = vpack.c.b16 %v776, %v776
    %v779 = vpack.c.b16 %v777, %v777
    %v780 = vpack.c.bf16 %v495, %v491
    %v782 = vunpack.c.l.b16 %v780
    %v783 = vunpack.c.h.b16 %v780
    %v784 = vpack.c.b16 %v782, %v782
    %v785 = vpack.c.b16 %v783, %v783
    %v786 = vpack.c.bf16 %v538, %v534
    %v788 = vunpack.c.l.b16 %v786
    %v789 = vunpack.c.h.b16 %v786
    %v790 = vpack.c.b16 %v788, %v788
    %v791 = vpack.c.b16 %v789, %v789
    %v793 = vsel %vm562, %v778, 0
    %v796 = vsel %vm562, %v784, 0
    %798 = vmatprep.subr.bf16.mxu0 0
    %799 = vmatpush1.bf16.xpose.msra.mxu0 %v796
    %800 = vmatprep.subr.bf16.mxu0 0
    %801 = vmatpush1.bf16.xpose.msra.mxu0 0
    %802 = vmatprep.subr.bf16.mxu0 0
    %803 = vmatpush1.bf16.xpose.msra.mxu0 0
    %804 = vmatprep.subr.bf16.mxu0 0
    %805 = vmatpush1.bf16.xpose.msra.mxu0 0
    %806 = vmatprep.subr.bf16.mxu0 0
    %807 = vmatpush1.bf16.xpose.msra.mxu0 0
    %808 = vmatprep.subr.bf16.mxu0 0
    %809 = vmatpush1.bf16.xpose.msra.mxu0 0
    %810 = vmatprep.subr.bf16.mxu0 0
    %811 = vmatpush1.bf16.xpose.msra.mxu0 0
    %812 = vmatprep.subr.bf16.mxu0 0
    %813 = vmatpush1.bf16.xpose.msra.mxu0 0
    %814 = vmatprep.subr.bf16.mxu0 0
    %815 = vmatpush1.bf16.xpose.msra.mxu0 0
    %816 = vmatprep.subr.bf16.mxu0 0
    %817 = vmatpush1.bf16.xpose.msra.mxu0 0
    %818 = vmatprep.subr.bf16.mxu0 0
    %819 = vmatpush1.bf16.xpose.msra.mxu0 0
    %820 = vmatprep.subr.bf16.mxu0 0
    %821 = vmatpush1.bf16.xpose.msra.mxu0 0
    %822 = vmatprep.subr.bf16.mxu0 0
    %823 = vmatpush1.bf16.xpose.msra.mxu0 0
    %824 = vmatprep.subr.bf16.mxu0 0
    %825 = vmatpush1.bf16.xpose.msra.mxu0 0
    %826 = vmatprep.subr.bf16.mxu0 0
    %827 = vmatpush1.bf16.xpose.msra.mxu0 0
    %828 = vmatprep.subr.bf16.mxu0 0
    %829 = vmatpush1.bf16.xpose.msra.mxu0 0
    %830 = vmatprep.mubr.bf16.mxu0 0
    %831 = vmatmul.mubr.bf16.gmra.mrb[0].mxu0 %v793
    %v832 = vpop.f32.mrb[0].mxu0
    %v833 = vadd.f32 0.0, %v832
    %v834 = vpop.f32.mrb[0].mxu0
    %v835 = vpop.f32.mrb[0].mxu0
    %v836 = vpop.f32.mrb[0].mxu0
    %837 = vdwg.mxu0
    %v839 = vsel %vm562, %v779, 0
    %v842 = vsel %vm562, %v785, 0
    %844 = vmatprep.subr.bf16.mxu0 0
    %845 = vmatpush1.bf16.xpose.msra.mxu0 %v842
    %846 = vmatprep.subr.bf16.mxu0 0
    %847 = vmatpush1.bf16.xpose.msra.mxu0 0
    %848 = vmatprep.subr.bf16.mxu0 0
    %849 = vmatpush1.bf16.xpose.msra.mxu0 0
    %850 = vmatprep.subr.bf16.mxu0 0
    %851 = vmatpush1.bf16.xpose.msra.mxu0 0
    %852 = vmatprep.subr.bf16.mxu0 0
    %853 = vmatpush1.bf16.xpose.msra.mxu0 0
    %854 = vmatprep.subr.bf16.mxu0 0
    %855 = vmatpush1.bf16.xpose.msra.mxu0 0
    %856 = vmatprep.subr.bf16.mxu0 0
    %857 = vmatpush1.bf16.xpose.msra.mxu0 0
    %858 = vmatprep.subr.bf16.mxu0 0
    %859 = vmatpush1.bf16.xpose.msra.mxu0 0
    %860 = vmatprep.subr.bf16.mxu0 0
    %861 = vmatpush1.bf16.xpose.msra.mxu0 0
    %862 = vmatprep.subr.bf16.mxu0 0
    %863 = vmatpush1.bf16.xpose.msra.mxu0 0
    %864 = vmatprep.subr.bf16.mxu0 0
    %865 = vmatpush1.bf16.xpose.msra.mxu0 0
    %866 = vmatprep.subr.bf16.mxu0 0
    %867 = vmatpush1.bf16.xpose.msra.mxu0 0
    %868 = vmatprep.subr.bf16.mxu0 0
    %869 = vmatpush1.bf16.xpose.msra.mxu0 0
    %870 = vmatprep.subr.bf16.mxu0 0
    %871 = vmatpush1.bf16.xpose.msra.mxu0 0
    %872 = vmatprep.subr.bf16.mxu0 0
    %873 = vmatpush1.bf16.xpose.msra.mxu0 0
    %874 = vmatprep.subr.bf16.mxu0 0
    %875 = vmatpush1.bf16.xpose.msra.mxu0 0
    %876 = vmatprep.mubr.bf16.mxu0 0
    %877 = vmatmul.mubr.bf16.gmra.mrb[0].mxu0 %v839
    %v878 = vpop.f32.mrb[0].mxu0
    %v879 = vadd.f32 0.0, %v878
    %v880 = vpop.f32.mrb[0].mxu0
    %v881 = vpop.f32.mrb[0].mxu0
    %v882 = vpop.f32.mrb[0].mxu0
    %883 = vdwg.mxu0
    %v884 = vsel %vm289, %v833, -1e+30
    %v885 = vsel %vm290, %v879, -1e+30
    %v886 = vsel %vm129, %v884, -inf
    %887 = vmax.xlane.f32.xlu0 %v886
    %v888 = vpop.xlane.xlu0 %887
    %v889 = vsel %vm129, %v885, -inf
    %890 = vmax.xlane.f32.xlu0 %v889
    %v891 = vpop.xlane.xlu0 %890
    %v892 = vsub.f32 %v884, %v888
    %v893 = vsub.f32 %v885, %v891
    %v894 = vmul.f32 %v892, 1.442695
    %v895 = vpow.pop %v894
    %v896 = vmul.f32 %v893, 1.442695
    %v897 = vpow.pop %v896
    %v898 = vsel %vm129, %v895, 0.0
    %899 = vadd.xlane.f32.xlu0 %v898
    %v900 = vpop.xlane.xlu0 %899
    %v901 = vsel %vm129, %v897, 0.0
    %902 = vadd.xlane.f32.xlu0 %v901
    %v903 = vpop.xlane.xlu0 %902
    %v904 = vrcp.pop %v900
    %v905 = vrcp.pop %v903
    %v906 = vmul.f32 %v895, %v904
    %v907 = vmul.f32 %v897, %v905
    %v908 = vpack.c.bf16 %v906, %v906
    %v909 = vpack.c.bf16 %v907, %v907
    %v911 = vsel %vm129, %v908, 0
    %v914 = vsel %vm133, %v790, 0
    %916 = vmatprep.subr.bf16.mxu0 0
    %917 = vmatpush1.bf16.msra.mxu0 %v914
    %918 = vmatprep.subr.bf16.mxu0 0
    %919 = vmatpush1.bf16.msra.mxu0 0
    %920 = vmatprep.subr.bf16.mxu0 0
    %921 = vmatpush1.bf16.msra.mxu0 0
    %922 = vmatprep.subr.bf16.mxu0 0
    %923 = vmatpush1.bf16.msra.mxu0 0
    %924 = vmatprep.subr.bf16.mxu0 0
    %925 = vmatpush1.bf16.msra.mxu0 0
    %926 = vmatprep.subr.bf16.mxu0 0
    %927 = vmatpush1.bf16.msra.mxu0 0
    %928 = vmatprep.subr.bf16.mxu0 0
    %929 = vmatpush1.bf16.msra.mxu0 0
    %930 = vmatprep.subr.bf16.mxu0 0
    %931 = vmatpush1.bf16.msra.mxu0 0
    %932 = vmatprep.subr.bf16.mxu0 0
    %933 = vmatpush1.bf16.msra.mxu0 0
    %934 = vmatprep.subr.bf16.mxu0 0
    %935 = vmatpush1.bf16.msra.mxu0 0
    %936 = vmatprep.subr.bf16.mxu0 0
    %937 = vmatpush1.bf16.msra.mxu0 0
    %938 = vmatprep.subr.bf16.mxu0 0
    %939 = vmatpush1.bf16.msra.mxu0 0
    %940 = vmatprep.subr.bf16.mxu0 0
    %941 = vmatpush1.bf16.msra.mxu0 0
    %942 = vmatprep.subr.bf16.mxu0 0
    %943 = vmatpush1.bf16.msra.mxu0 0
    %944 = vmatprep.subr.bf16.mxu0 0
    %945 = vmatpush1.bf16.msra.mxu0 0
    %946 = vmatprep.subr.bf16.mxu0 0
    %947 = vmatpush1.bf16.msra.mxu0 0
    %948 = vmatprep.mubr.bf16.mxu0 0
    %949 = vmatmul.mubr.bf16.gmra.mrb[0].mxu0 %v911
    %v950 = vpop.f32.mrb[0].mxu0
    %v951 = vadd.f32 0.0, %v950
    %v952 = vpop.f32.mrb[0].mxu0
    %v953 = vpop.f32.mrb[0].mxu0
    %v954 = vpop.f32.mrb[0].mxu0
    %955 = vdwg.mxu0
    %v957 = vsel %vm129, %v909, 0
    %v960 = vsel %vm133, %v791, 0
    %962 = vmatprep.subr.bf16.mxu0 0
    %963 = vmatpush1.bf16.msra.mxu0 %v960
    %964 = vmatprep.subr.bf16.mxu0 0
    %965 = vmatpush1.bf16.msra.mxu0 0
    %966 = vmatprep.subr.bf16.mxu0 0
    %967 = vmatpush1.bf16.msra.mxu0 0
    %968 = vmatprep.subr.bf16.mxu0 0
    %969 = vmatpush1.bf16.msra.mxu0 0
    %970 = vmatprep.subr.bf16.mxu0 0
    %971 = vmatpush1.bf16.msra.mxu0 0
    %972 = vmatprep.subr.bf16.mxu0 0
    %973 = vmatpush1.bf16.msra.mxu0 0
    %974 = vmatprep.subr.bf16.mxu0 0
    %975 = vmatpush1.bf16.msra.mxu0 0
    %976 = vmatprep.subr.bf16.mxu0 0
    %977 = vmatpush1.bf16.msra.mxu0 0
    %978 = vmatprep.subr.bf16.mxu0 0
    %979 = vmatpush1.bf16.msra.mxu0 0
    %980 = vmatprep.subr.bf16.mxu0 0
    %981 = vmatpush1.bf16.msra.mxu0 0
    %982 = vmatprep.subr.bf16.mxu0 0
    %983 = vmatpush1.bf16.msra.mxu0 0
    %984 = vmatprep.subr.bf16.mxu0 0
    %985 = vmatpush1.bf16.msra.mxu0 0
    %986 = vmatprep.subr.bf16.mxu0 0
    %987 = vmatpush1.bf16.msra.mxu0 0
    %988 = vmatprep.subr.bf16.mxu0 0
    %989 = vmatpush1.bf16.msra.mxu0 0
    %990 = vmatprep.subr.bf16.mxu0 0
    %991 = vmatpush1.bf16.msra.mxu0 0
    %992 = vmatprep.subr.bf16.mxu0 0
    %993 = vmatpush1.bf16.msra.mxu0 0
    %994 = vmatprep.mubr.bf16.mxu0 0
    %995 = vmatmul.mubr.bf16.gmra.mrb[0].mxu0 %v957
    %v996 = vpop.f32.mrb[0].mxu0
    %v997 = vadd.f32 0.0, %v996
    %v998 = vpop.f32.mrb[0].mxu0
    %v999 = vpop.f32.mrb[0].mxu0
    %v1000 = vpop.f32.mrb[0].mxu0
    %1001 = vdwg.mxu0
    %v1002 = vpack.c.bf16 %v997, %v951
    %v1005 = vunpack.c.l.b16 %v542
    %v1006 = vunpack.c.l.b16 %v543
    %v1007 = vpack.c.b16 %v1006, %v1005
    %v1010 = vsel %vm562, %v1002, 0
    %1012 = vmatprep.subr.bf16.mxu0 0
    %1013 = vmatpush1.bf16.msra.mxu0 %v1007
    %1014 = vmatprep.subr.bf16.mxu0 0
    %1015 = vmatpush1.bf16.msra.mxu0 0
    %1016 = vmatprep.subr.bf16.mxu0 0
    %1017 = vmatpush1.bf16.msra.mxu0 0
    %1018 = vmatprep.subr.bf16.mxu0 0
    %1019 = vmatpush1.bf16.msra.mxu0 0
    %1020 = vmatprep.subr.bf16.mxu0 0
    %1021 = vmatpush1.bf16.msra.mxu0 0
    %1022 = vmatprep.subr.bf16.mxu0 0
    %1023 = vmatpush1.bf16.msra.mxu0 0
    %1024 = vmatprep.subr.bf16.mxu0 0
    %1025 = vmatpush1.bf16.msra.mxu0 0
    %1026 = vmatprep.subr.bf16.mxu0 0
    %1027 = vmatpush1.bf16.msra.mxu0 0
    %1028 = vmatprep.subr.bf16.mxu0 0
    %1029 = vmatpush1.bf16.msra.mxu0 0
    %1030 = vmatprep.subr.bf16.mxu0 0
    %1031 = vmatpush1.bf16.msra.mxu0 0
    %1032 = vmatprep.subr.bf16.mxu0 0
    %1033 = vmatpush1.bf16.msra.mxu0 0
    %1034 = vmatprep.subr.bf16.mxu0 0
    %1035 = vmatpush1.bf16.msra.mxu0 0
    %1036 = vmatprep.subr.bf16.mxu0 0
    %1037 = vmatpush1.bf16.msra.mxu0 0
    %1038 = vmatprep.subr.bf16.mxu0 0
    %1039 = vmatpush1.bf16.msra.mxu0 0
    %1040 = vmatprep.subr.bf16.mxu0 0
    %1041 = vmatpush1.bf16.msra.mxu0 0
    %1042 = vmatprep.subr.bf16.mxu0 0
    %1043 = vmatpush1.bf16.msra.mxu0 0
    %1044 = vmatprep.mubr.bf16.mxu0 0
    %1045 = vmatmul.mubr.bf16.gmra.mrb[0].mxu0 %v1010
    %v1046 = vpop.f32.mrb[0].mxu0
    %v1047 = vadd.f32 0.0, %v1046
    %v1048 = vpop.f32.mrb[0].mxu0
    %v1049 = vpop.f32.mrb[0].mxu0
    %v1050 = vadd.f32 0.0, %v1049
    %v1051 = vpop.f32.mrb[0].mxu0
    %1052 = vdwg.mxu0
    %v1055 = vunpack.c.l.b16 %v540
    %v1056 = vunpack.c.l.b16 %v541
    %v1057 = vpack.c.b16 %v1056, %v1055
    %v1060 = vsel %vm562, %v773, 0
    %1062 = vmatprep.subr.bf16.mxu0 0
    %1063 = vmatpush1.bf16.msra.mxu0 %v1057
    %1064 = vmatprep.subr.bf16.mxu0 0
    %1065 = vmatpush1.bf16.msra.mxu0 0
    %1066 = vmatprep.subr.bf16.mxu0 0
    %1067 = vmatpush1.bf16.msra.mxu0 0
    %1068 = vmatprep.subr.bf16.mxu0 0
    %1069 = vmatpush1.bf16.msra.mxu0 0
    %1070 = vmatprep.subr.bf16.mxu0 0
    %1071 = vmatpush1.bf16.msra.mxu0 0
    %1072 = vmatprep.subr.bf16.mxu0 0
    %1073 = vmatpush1.bf16.msra.mxu0 0
    %1074 = vmatprep.subr.bf16.mxu0 0
    %1075 = vmatpush1.bf16.msra.mxu0 0
    %1076 = vmatprep.subr.bf16.mxu0 0
    %1077 = vmatpush1.bf16.msra.mxu0 0
    %1078 = vmatprep.subr.bf16.mxu0 0
    %1079 = vmatpush1.bf16.msra.mxu0 0
    %1080 = vmatprep.subr.bf16.mxu0 0
    %1081 = vmatpush1.bf16.msra.mxu0 0
    %1082 = vmatprep.subr.bf16.mxu0 0
    %1083 = vmatpush1.bf16.msra.mxu0 0
    %1084 = vmatprep.subr.bf16.mxu0 0
    %1085 = vmatpush1.bf16.msra.mxu0 0
    %1086 = vmatprep.subr.bf16.mxu0 0
    %1087 = vmatpush1.bf16.msra.mxu0 0
    %1088 = vmatprep.subr.bf16.mxu0 0
    %1089 = vmatpush1.bf16.msra.mxu0 0
    %1090 = vmatprep.subr.bf16.mxu0 0
    %1091 = vmatpush1.bf16.msra.mxu0 0
    %1092 = vmatprep.subr.bf16.mxu0 0
    %1093 = vmatpush1.bf16.msra.mxu0 0
    %1094 = vmatprep.mubr.bf16.mxu0 0
    %1095 = vmatmul.mubr.bf16.gmra.mrb[0].mxu0 %v1060
    %v1096 = vpop.f32.mrb[0].mxu0
    %v1097 = vadd.f32 %v1047, %v1096
    %v1098 = vpop.f32.mrb[0].mxu0
    %v1099 = vpop.f32.mrb[0].mxu0
    %v1100 = vadd.f32 %v1050, %v1099
    %v1101 = vpop.f32.mrb[0].mxu0
    %1102 = vdwg.mxu0
    %v1103 = vadd.f32 %v241, %v1097
    %v1104 = vadd.f32 %v244, %v1100
    %v1105 = vsel %vm291, %v1103, 0.0
    %1106 = vadd.xlane.f32.xlu0 %v1105
    %v1107 = vpop.xlane.xlu0 %1106
    %v1108 = vsel %vm291, %v1104, 0.0
    %1109 = vadd.xlane.f32.xlu0 %v1108
    %v1110 = vpop.xlane.xlu0 %1109
    %v1111 = vmul.f32 %v1107, %v298
    %v1112 = vmul.f32 %v1110, %v298
    %v1113 = vmul.f32 %v1103, %v1103
    %v1114 = vmul.f32 %v1104, %v1104
    %v1115 = vsel %vm291, %v1113, 0.0
    %1116 = vadd.xlane.f32.xlu0 %v1115
    %v1117 = vpop.xlane.xlu0 %1116
    %v1118 = vsel %vm291, %v1114, 0.0
    %1119 = vadd.xlane.f32.xlu0 %v1118
    %v1120 = vpop.xlane.xlu0 %1119
    %v1121 = vmul.f32 %v1117, %v298
    %v1122 = vmul.f32 %v1120, %v298
    %v1123 = vmul.f32 %v1111, %v1111
    %v1124 = vmul.f32 %v1112, %v1112
    %v1125 = vsub.f32 %v1121, %v1123
    %v1126 = vsub.f32 %v1122, %v1124
    %v1127 = vadd.f32 %v1125, 1e-05
    %v1128 = vadd.f32 %v1126, 1e-05
    %v1129 = vrsqrt.pop %v1127
    %v1130 = vrsqrt.pop %v1128
    %v1131 = vsub.f32 %v1103, %v1111
    %v1132 = vsub.f32 %v1104, %v1112
    %v1133 = vmul.f32 %v1131, %v1129
    %v1134 = vmul.f32 %v1132, %v1130
    %v1135 = vlaneseq
    %v1136 = vshrl.u32 %v1135, 7
    %v1137 = vsub.s32 1, %v1136
    %v1138 = vrot.slane %v86, %v1137
    %v1139 = vmul.f32 %v1133, %v1138
    %v1140 = vmul.f32 %v1134, %v1138
    %v1141 = vlaneseq
    %v1142 = vshrl.u32 %v1141, 7
    %v1143 = vsub.s32 1, %v1142
    %v1144 = vrot.slane %v87, %v1143
    %v1145 = vadd.f32 %v1139, %v1144
    %v1146 = vadd.f32 %v1140, %v1144
    %v1147 = vpack.c.bf16 %v1146, %v1145
    %v1148 = vld [vmem:[#allocation4] sm:$0xf]
    %v1149 = vld [vmem:[#allocation4 + $0x4] sm:$0xf]
    %v1150 = vld [vmem:[#allocation4 + $0x8] sm:$0xf]
    %v1151 = vld [vmem:[#allocation4 + $0xc] sm:$0xf]
    %v1152 = vld [vmem:[%s9] sm:$0x1]
    %v1154 = vlaneseq
    %v1155 = vshrl.u32 %v1154, 7
    %v1156 = vsub.s32 0, %v1155
    %v1157 = vrot.slane %v1152, %v1156
    %v1163 = vunpack.c.l.b16 %v1148
    %v1164 = vunpack.c.l.b16 %v1149
    %v1165 = vunpack.c.l.b16 %v1150
    %v1166 = vunpack.c.l.b16 %v1151
    %v1167 = vpack.c.b16 %v1164, %v1163
    %v1168 = vpack.c.b16 %v1166, %v1165
    %v1172 = vsel %vm291, %v1147, 0
    %1174 = vmatprep.subr.bf16.mxu0 0
    %1175 = vmatpush1.bf16.msra.mxu0 %v1167
    %1176 = vmatprep.subr.bf16.mxu0 0
    %1177 = vmatpush1.bf16.msra.mxu0 %v1168
    %1178 = vmatprep.subr.bf16.mxu0 0
    %1179 = vmatpush1.bf16.msra.mxu0 0
    %1180 = vmatprep.subr.bf16.mxu0 0
    %1181 = vmatpush1.bf16.msra.mxu0 0
    %1182 = vmatprep.subr.bf16.mxu0 0
    %1183 = vmatpush1.bf16.msra.mxu0 0
    %1184 = vmatprep.subr.bf16.mxu0 0
    %1185 = vmatpush1.bf16.msra.mxu0 0
    %1186 = vmatprep.subr.bf16.mxu0 0
    %1187 = vmatpush1.bf16.msra.mxu0 0
    %1188 = vmatprep.subr.bf16.mxu0 0
    %1189 = vmatpush1.bf16.msra.mxu0 0
    %1190 = vmatprep.subr.bf16.mxu0 0
    %1191 = vmatpush1.bf16.msra.mxu0 0
    %1192 = vmatprep.subr.bf16.mxu0 0
    %1193 = vmatpush1.bf16.msra.mxu0 0
    %1194 = vmatprep.subr.bf16.mxu0 0
    %1195 = vmatpush1.bf16.msra.mxu0 0
    %1196 = vmatprep.subr.bf16.mxu0 0
    %1197 = vmatpush1.bf16.msra.mxu0 0
    %1198 = vmatprep.subr.bf16.mxu0 0
    %1199 = vmatpush1.bf16.msra.mxu0 0
    %1200 = vmatprep.subr.bf16.mxu0 0
    %1201 = vmatpush1.bf16.msra.mxu0 0
    %1202 = vmatprep.subr.bf16.mxu0 0
    %1203 = vmatpush1.bf16.msra.mxu0 0
    %1204 = vmatprep.subr.bf16.mxu0 0
    %1205 = vmatpush1.bf16.msra.mxu0 0
    %1206 = vmatprep.mubr.bf16.mxu0 0
    %1207 = vmatmul.mubr.bf16.gmra.mrb[0].mxu0 %v1172
    %v1208 = vpop.f32.mrb[0].mxu0
    %v1209 = vadd.f32 %v1157, %v1208
    %v1210 = vpop.f32.mrb[0].mxu0
    %v1211 = vpop.f32.mrb[0].mxu0
    %v1212 = vadd.f32 %v1157, %v1211
    %v1213 = vpop.f32.mrb[0].mxu0
    %1214 = vdwg.mxu0
    %v1215 = vmax.f32 %v1209, 0.0
    %v1216 = vmax.f32 %v1212, 0.0
    %v1217 = vpack.c.bf16 %v1216, %v1215
    %v1218 = vld [vmem:[%s10] sm:$0xf]
    %v1219 = vld [vmem:[%s10 + $0x4] sm:$0xf]
    %v1220 = vld [vmem:[%s10 + $0x8] sm:$0xf]
    %v1221 = vld [vmem:[%s10 + $0xc] sm:$0xf]
    %v1222 = vld [vmem:[%s10 + $0x10] sm:$0xf]
    %v1223 = vld [vmem:[%s10 + $0x14] sm:$0xf]
    %v1224 = vld [vmem:[%s10 + $0x18] sm:$0xf]
    %v1225 = vld [vmem:[%s10 + $0x1c] sm:$0xf]
    %v1234 = vunpack.c.l.b16 %v1218
    %v1235 = vunpack.c.l.b16 %v1219
    %v1236 = vunpack.c.l.b16 %v1220
    %v1237 = vunpack.c.l.b16 %v1221
    %v1238 = vunpack.c.l.b16 %v1222
    %v1239 = vunpack.c.l.b16 %v1223
    %v1240 = vunpack.c.l.b16 %v1224
    %v1241 = vunpack.c.l.b16 %v1225
    %v1242 = vpack.c.b16 %v1235, %v1234
    %v1243 = vpack.c.b16 %v1237, %v1236
    %v1244 = vpack.c.b16 %v1239, %v1238
    %v1245 = vpack.c.b16 %v1241, %v1240
    %v1251 = vsel %vm202, %v1217, 0
    %1253 = vmatprep.subr.bf16.mxu0 0
    %1254 = vmatpush1.bf16.msra.mxu0 %v1242
    %1255 = vmatprep.subr.bf16.mxu0 0
    %1256 = vmatpush1.bf16.msra.mxu0 %v1243
    %1257 = vmatprep.subr.bf16.mxu0 0
    %1258 = vmatpush1.bf16.msra.mxu0 %v1244
    %1259 = vmatprep.subr.bf16.mxu0 0
    %1260 = vmatpush1.bf16.msra.mxu0 %v1245
    %1261 = vmatprep.subr.bf16.mxu0 0
    %1262 = vmatpush1.bf16.msra.mxu0 0
    %1263 = vmatprep.subr.bf16.mxu0 0
    %1264 = vmatpush1.bf16.msra.mxu0 0
    %1265 = vmatprep.subr.bf16.mxu0 0
    %1266 = vmatpush1.bf16.msra.mxu0 0
    %1267 = vmatprep.subr.bf16.mxu0 0
    %1268 = vmatpush1.bf16.msra.mxu0 0
    %1269 = vmatprep.subr.bf16.mxu0 0
    %1270 = vmatpush1.bf16.msra.mxu0 0
    %1271 = vmatprep.subr.bf16.mxu0 0
    %1272 = vmatpush1.bf16.msra.mxu0 0
    %1273 = vmatprep.subr.bf16.mxu0 0
    %1274 = vmatpush1.bf16.msra.mxu0 0
    %1275 = vmatprep.subr.bf16.mxu0 0
    %1276 = vmatpush1.bf16.msra.mxu0 0
    %1277 = vmatprep.subr.bf16.mxu0 0
    %1278 = vmatpush1.bf16.msra.mxu0 0
    %1279 = vmatprep.subr.bf16.mxu0 0
    %1280 = vmatpush1.bf16.msra.mxu0 0
    %1281 = vmatprep.subr.bf16.mxu0 0
    %1282 = vmatpush1.bf16.msra.mxu0 0
    %1283 = vmatprep.subr.bf16.mxu0 0
    %1284 = vmatpush1.bf16.msra.mxu0 0
    %1285 = vmatprep.mubr.bf16.mxu0 0
    %1286 = vmatmul.mubr.bf16.gmra.mrb[0].mxu0 %v1251
    %v1287 = vpop.f32.mrb[0].mxu0
    %v1288 = vadd.f32 0.0, %v1287
    %v1289 = vpop.f32.mrb[0].mxu0
    %v1290 = vpop.f32.mrb[0].mxu0
    %v1291 = vadd.f32 0.0, %v1290
    %v1292 = vpop.f32.mrb[0].mxu0
    %1293 = vdwg.mxu0
    %v1294 = vadd.f32 %v1103, %v1288
    %v1295 = vadd.f32 %v1104, %v1291
    %v1296 = vld [vmem:[%s11] sm:$0x1]
    %v1298 = vlaneseq
    %v1299 = vshrl.u32 %v1298, 7
    %v1300 = vsub.s32 0, %v1299
    %v1301 = vrot.slane %v1296, %v1300
    %v1303 = vadd.f32 %v1294, %v1301
    %v1304 = vadd.f32 %v1295, %v1301
    %v1305 = vsel %vm291, %v1303, 0.0
    %1306 = vadd.xlane.f32.xlu0 %v1305
    %v1307 = vpop.xlane.xlu0 %1306
    %v1308 = vsel %vm291, %v1304, 0.0
    %1309 = vadd.xlane.f32.xlu0 %v1308
    %v1310 = vpop.xlane.xlu0 %1309
    %v1311 = vmul.f32 %v1307, %v298
    %v1312 = vmul.f32 %v1310, %v298
    %v1313 = vmul.f32 %v1303, %v1303
    %v1314 = vmul.f32 %v1304, %v1304
    %v1315 = vsel %vm291, %v1313, 0.0
    %1316 = vadd.xlane.f32.xlu0 %v1315
    %v1317 = vpop.xlane.xlu0 %1316
    %v1318 = vsel %vm291, %v1314, 0.0
    %1319 = vadd.xlane.f32.xlu0 %v1318
    %v1320 = vpop.xlane.xlu0 %1319
    %v1321 = vmul.f32 %v1317, %v298
    %v1322 = vmul.f32 %v1320, %v298
    %v1323 = vmul.f32 %v1311, %v1311
    %v1324 = vmul.f32 %v1312, %v1312
    %v1325 = vsub.f32 %v1321, %v1323
    %v1326 = vsub.f32 %v1322, %v1324
    %v1327 = vadd.f32 %v1325, 1e-05
    %v1328 = vadd.f32 %v1326, 1e-05
    %v1329 = vrsqrt.pop %v1327
    %v1330 = vrsqrt.pop %v1328
    %v1331 = vsub.f32 %v1303, %v1311
    %v1332 = vsub.f32 %v1304, %v1312
    %v1333 = vmul.f32 %v1331, %v1329
    %v1334 = vmul.f32 %v1332, %v1330
    %v1335 = vlaneseq
    %v1336 = vshrl.u32 %v1335, 7
    %v1337 = vsub.s32 2, %v1336
    %v1338 = vrot.slane %v86, %v1337
    %v1339 = vmul.f32 %v1333, %v1338
    %v1340 = vmul.f32 %v1334, %v1338
    %v1341 = vlaneseq
    %v1342 = vshrl.u32 %v1341, 7
    %v1343 = vsub.s32 2, %v1342
    %v1344 = vrot.slane %v87, %v1343
    %v1345 = vadd.f32 %v1339, %v1344
    %v1346 = vadd.f32 %v1340, %v1344
    %v1347 = vpack.c.bf16 %v1346, %v1345
    %v1348 = vld [vmem:[#allocation6] sm:$0xf]
    %v1349 = vld [vmem:[#allocation6 + $0x4] sm:$0xf]
    %v1350 = vld [vmem:[#allocation6 + $0x8] sm:$0xf]
    %v1351 = vld [vmem:[#allocation6 + $0xc] sm:$0xf]
    %v1356 = vunpack.c.l.b16 %v1348
    %v1357 = vunpack.c.l.b16 %v1349
    %v1358 = vunpack.c.l.b16 %v1350
    %v1359 = vunpack.c.l.b16 %v1351
    %v1360 = vpack.c.b16 %v1357, %v1356
    %v1361 = vpack.c.b16 %v1359, %v1358
    %v1365 = vsel %vm291, %v1347, 0
    %1367 = vmatprep.subr.bf16.mxu0 0
    %1368 = vmatpush1.bf16.msra.mxu0 %v1360
    %1369 = vmatprep.subr.bf16.mxu0 0
    %1370 = vmatpush1.bf16.msra.mxu0 %v1361
    %1371 = vmatprep.subr.bf16.mxu0 0
    %1372 = vmatpush1.bf16.msra.mxu0 0
    %1373 = vmatprep.subr.bf16.mxu0 0
    %1374 = vmatpush1.bf16.msra.mxu0 0
    %1375 = vmatprep.subr.bf16.mxu0 0
    %1376 = vmatpush1.bf16.msra.mxu0 0
    %1377 = vmatprep.subr.bf16.mxu0 0
    %1378 = vmatpush1.bf16.msra.mxu0 0
    %1379 = vmatprep.subr.bf16.mxu0 0
    %1380 = vmatpush1.bf16.msra.mxu0 0
    %1381 = vmatprep.subr.bf16.mxu0 0
    %1382 = vmatpush1.bf16.msra.mxu0 0
    %1383 = vmatprep.subr.bf16.mxu0 0
    %1384 = vmatpush1.bf16.msra.mxu0 0
    %1385 = vmatprep.subr.bf16.mxu0 0
    %1386 = vmatpush1.bf16.msra.mxu0 0
    %1387 = vmatprep.subr.bf16.mxu0 0
    %1388 = vmatpush1.bf16.msra.mxu0 0
    %1389 = vmatprep.subr.bf16.mxu0 0
    %1390 = vmatpush1.bf16.msra.mxu0 0
    %1391 = vmatprep.subr.bf16.mxu0 0
    %1392 = vmatpush1.bf16.msra.mxu0 0
    %1393 = vmatprep.subr.bf16.mxu0 0
    %1394 = vmatpush1.bf16.msra.mxu0 0
    %1395 = vmatprep.subr.bf16.mxu0 0
    %1396 = vmatpush1.bf16.msra.mxu0 0
    %1397 = vmatprep.subr.bf16.mxu0 0
    %1398 = vmatpush1.bf16.msra.mxu0 0
    %1399 = vmatprep.mubr.bf16.mxu0 0
    %1400 = vmatmul.mubr.bf16.gmra.mrb[0].mxu0 %v1365
    %v1401 = vpop.f32.mrb[0].mxu0
    %v1402 = vadd.f32 0.0, %v1401
    %v1403 = vpop.f32.mrb[0].mxu0
    %v1404 = vpop.f32.mrb[0].mxu0
    %v1405 = vadd.f32 0.0, %v1404
    %v1406 = vpop.f32.mrb[0].mxu0
    %1407 = vdwg.mxu0
    %1408 = vst [vmem:[%s13] sm:$0xff] %v1402
    %1409 = vst [vmem:[%s13 + $0x8] sm:$0xff] %v1405
    // Predicated region
    $region66: #{autoregressive_wrapper_forward.1} parent=1 // pred_check
      _
    $region67: #{autoregressive_wrapper_forward.1} parent=1 // pred_check_branch
      %1411 = sbr.rel (0) target = $region69
    $region68: #{autoregressive_wrapper_forward.1} parent=1 // pred_region
      _
    $region69: #{autoregressive_wrapper_forward.1} parent=1 // pred_fallthru
      _
    // Predicated region
    $region70: #{autoregressive_wrapper_forward.1} parent=1 // pred_check
      _
    $region71: #{autoregressive_wrapper_forward.1} parent=1 // pred_check_branch
      %1413 = sbr.rel (0) target = $region73
    $region72: #{autoregressive_wrapper_forward.1} parent=1 // pred_region
      _
    $region73: #{autoregressive_wrapper_forward.1} parent=1 // pred_fallthru
      _
    %1414 = vsyncpa [#allocation3], 1
    %1415 = vsyncpa [#allocation5], 1

</llo_original>
